<compile_context>
chip_gen: v7x
topology: tpu7x:2x2x1
jax: 0.10.0
libtpu: 0.0.40
codegen_flags: <defaults>
</compile_context>

<pallas_src>
import jax
import jax.numpy as jnp
from jax.experimental import pallas as pl
from jax.experimental.pallas import tpu as pltpu

D_IN = 25        # raw input features
D_H = 100        # raw hidden width
D_IN_P = 32      # padded input features (round(t) rides in column 25)
D_H_P = 128      # padded hidden width (lane multiple)
Y_COL = 100      # lane of the fused output that carries y (unused h_rep padding lane)
TB_MIN = 128     # minimum batch tile (full MXU rows)
TB_MAX = 1024    # cap on batch tile


def _fcnet_kernel(
    x_ref,                       # (TB, 32) f32; column 25 = round(t)
    w_in_ref, b_in_ref,          # (32,128) bf16 / (1,128) f32
    w_stk_ref, b_stk_ref,        # stacked layers [1,4,5,6]: (4,128,128) bf16 / (4,1,128) f32
    w23_ref, b23_ref,            # fused W2|W3h: (128,256) bf16 / (1,256) f32
    w3t_ref,                     # (1,128) f32: W3 row applied to round(t)
    out_ref,                     # (TB,128) f32: cols 0..99 = h_rep, col 100 = y
):
    bf16 = jnp.bfloat16

    def lin(h_f32, w_bf16, b_f32):
        # bf16 MXU matmul with f32 accumulation, f32 bias add.
        return jnp.dot(h_f32.astype(bf16), w_bf16,
                       preferred_element_type=jnp.float32) + b_f32

    x = x_ref[...]                                   # (TB, 32) f32
    t_r = x[:, D_IN:D_IN + 1]                        # (TB, 1) round(t), pre-rounded on host

    h0 = jax.nn.relu(lin(x, w_in_ref[...], b_in_ref[...]))        # (TB,128)
    h1 = jax.nn.relu(lin(h0, w_stk_ref[0], b_stk_ref[0]))         # (TB,128)

    # One 256-wide dot covers both heads that consume h1 (W2 and W3h).
    pre23 = lin(h1, w23_ref[...], b23_ref[...])                   # (TB,256)
    h_rep = jax.nn.relu(pre23[:, :D_H_P])                         # (TB,128); lanes 100..127 == 0
    h3 = jax.nn.relu(pre23[:, D_H_P:] + t_r * w3t_ref[...])       # (TB,128)

    h4 = jax.nn.relu(lin(h3, w_stk_ref[1], b_stk_ref[1]))         # (TB,128)
    h5 = jax.nn.relu(lin(h4, w_stk_ref[2], b_stk_ref[2]))         # (TB,128)

    # W6 is placed entirely in column Y_COL, zeros elsewhere, so y_pad is zero
    # outside that lane and h_rep is zero inside it -> a plain add fuses them.
    y_pad = lin(h5, w_stk_ref[3], b_stk_ref[3])                   # (TB,128), col Y_COL = y

    out_ref[...] = (h_rep + y_pad).astype(out_ref.dtype)


def _choose_tb(B):
    """Batch tile: big enough to amortize per-step overhead, >=2 steps when B>128."""
    if B <= TB_MIN:
        return TB_MIN
    half = -(-B // 2)                       # ceil(B/2): keep >= 2 grid steps (v7x: 2 TCs)
    tb = -(-half // TB_MIN) * TB_MIN        # round up to a multiple of 128
    return min(tb, TB_MAX)


def fcnet_forward(x, t, prepared_params):
    """x: (B, 25) f32, t: (B, 1) f32 -> (y (B, 1) f32, h_rep (B, 100) f32)."""
    (w_in_p, b_in_p, w_stk, b_stk, w23, b23, w3t_p) = prepared_params

    B = x.shape[0]
    tb = _choose_tb(B)
    B_pad = -(-B // tb) * tb

    # Zero-pad batch to a tile multiple; features 25 -> 32 with round(t) in column 25
    # (W_in row 25 is zero, so it is inert through the first matmul).
    x_p = jnp.zeros((B_pad, D_IN_P), jnp.float32)
    x_p = x_p.at[:B, :D_IN].set(x.astype(jnp.float32))
    x_p = x_p.at[:B, D_IN:D_IN + 1].set(jnp.round(t.astype(jnp.float32)))

    grid = (B_pad // tb,)

    def _const(shape):
        # whole (small) parameter array resident in VMEM every grid step
        return pl.BlockSpec(shape, lambda i: (0,) * len(shape))

    in_specs = [
        pl.BlockSpec((tb, D_IN_P), lambda i: (i, 0)),   # x (+ round(t) in col 25)
        _const((D_IN_P, D_H_P)),                        # w_in
        _const((1, D_H_P)),                             # b_in
        _const((4, D_H_P, D_H_P)),                      # stacked W1, W4, W5, W6
        _const((4, 1, D_H_P)),                          # stacked b1, b4, b5, b6
        _const((D_H_P, 2 * D_H_P)),                     # fused W2 | W3h
        _const((1, 2 * D_H_P)),                         # fused b2 | b3
        _const((1, D_H_P)),                             # w3t
    ]
    out_specs = pl.BlockSpec((tb, D_H_P), lambda i: (i, 0))   # fused h_rep + y
    out_shape = jax.ShapeDtypeStruct((B_pad, D_H_P), jnp.float32)

    flops = 2 * B_pad * (D_IN_P * D_H_P + 4 * D_H_P * D_H_P + D_H_P * 2 * D_H_P)
    param_bytes = sum(int(p.size) * p.dtype.itemsize for p in prepared_params)
    io_bytes = (int(x_p.size) + B_pad * D_H_P) * 4
    cost = pl.CostEstimate(flops=flops, transcendentals=0,
                           bytes_accessed=param_bytes + io_bytes)

    fused = pl.pallas_call(
        _fcnet_kernel,
        out_shape=out_shape,
        grid_spec=pltpu.PrefetchScalarGridSpec(
            num_scalar_prefetch=0,
            grid=grid,
            in_specs=in_specs,
            out_specs=out_specs,
        ),
        compiler_params=pltpu.CompilerParams(
            dimension_semantics=("parallel",),
        ),
        cost_estimate=cost,
    )(x_p, w_in_p, b_in_p, w_stk, b_stk, w23, b23, w3t_p)

    return fused[:B, Y_COL:Y_COL + 1], fused[:B, :D_H]


def init_params(key):
    """Raw params mimicking nn.Linear default init (uniform +-1/sqrt(fan_in)).

    Weights are (in_features, out_features); biases (1, out_features).
    """
    def linear(key, fan_in, fan_out):
        kw, kb = jax.random.split(key)
        bound = 1.0 / jnp.sqrt(fan_in)
        w = jax.random.uniform(kw, (fan_in, fan_out), jnp.float32, -bound, bound)
        b = jax.random.uniform(kb, (1, fan_out), jnp.float32, -bound, bound)
        return w, b

    keys = jax.random.split(key, 7)
    w_in, b_in = linear(keys[0], 25, 100)
    w1, b1 = linear(keys[1], 100, 100)
    w2, b2 = linear(keys[2], 100, 100)
    w3, b3 = linear(keys[3], 101, 100)   # layer_3 takes [h, round(t)]
    w4, b4 = linear(keys[4], 100, 100)
    w5, b5 = linear(keys[5], 100, 100)
    w6, b6 = linear(keys[6], 100, 1)

    w3h = w3[:100, :]   # part applied to h
    w3t = w3[100:, :]   # part applied to round(t)
    return (w_in, b_in, w1, b1, w2, b2, w3h, w3t, b3, w4, b4, w5, b5, w6, b6)


def prepare_params(raw):
    """Zero-pad to lane-aligned shapes, stack/fuse layers, cast weights to bf16."""
    (w_in, b_in, w1, b1, w2, b2, w3h, w3t, b3, w4, b4, w5, b5, w6, b6) = raw

    def pad_w(w, rows=D_H_P, cols=D_H_P):
        out = jnp.zeros((rows, cols), jnp.float32)
        return out.at[:w.shape[0], :w.shape[1]].set(w)

    def pad_b(b, cols=D_H_P):
        out = jnp.zeros((1, cols), jnp.float32)
        return out.at[:, :b.shape[1]].set(b)

    w_in_p = pad_w(w_in, rows=D_IN_P)                                 # (32,128)
    b_in_p = pad_b(b_in)                                              # (1,128)

    # Final head: single real column lives in lane Y_COL so it can be added
    # straight into h_rep's zero padding lane inside the kernel.
    w6_p = jnp.zeros((D_H_P, D_H_P), jnp.float32).at[:D_H, Y_COL].set(w6[:, 0])
    b6_p = jnp.zeros((1, D_H_P), jnp.float32).at[0, Y_COL].set(b6[0, 0])

    # Stacked square layers 1, 4, 5, 6 -> one resident (4,128,128) block.
    w_stk = jnp.stack([pad_w(w1), pad_w(w4), pad_w(w5), w6_p], axis=0)   # (4,128,128)
    b_stk = jnp.stack([pad_b(b1), pad_b(b4), pad_b(b5), b6_p], axis=0)   # (4,1,128)

    # Fused W2 | W3h -> one 256-wide dot from h1 (fills 256-wide MXU on v6e/v7x).
    w23 = jnp.concatenate([pad_w(w2), pad_w(w3h)], axis=1)               # (128,256)
    b23 = jnp.concatenate([pad_b(b2), pad_b(b3)], axis=1)                # (1,256)

    w3t_p = pad_b(w3t)                                                   # (1,128)

    return (w_in_p.astype(jnp.bfloat16),
            b_in_p,
            w_stk.astype(jnp.bfloat16),
            b_stk,
            w23.astype(jnp.bfloat16),
            b23,
            w3t_p)


def _reference_forward(x, t, raw):
    (w_in, b_in, w1, b1, w2, b2, w3h, w3t, b3, w4, b4, w5, b5, w6, b6) = raw
    relu = jax.nn.relu
    h0 = relu(x @ w_in + b_in)
    h1 = relu(h0 @ w1 + b1)
    h_rep = relu(h1 @ w2 + b2)
    h_cat = jnp.concatenate([h1, jnp.round(t)], axis=1)
    w3 = jnp.concatenate([w3h, w3t], axis=0)
    h3 = relu(h_cat @ w3 + b3)
    h4 = relu(h3 @ w4 + b4)
    h5 = relu(h4 @ w5 + b5)
    y = h5 @ w6 + b6
    return y, h_rep


if __name__ == "__main__":
    key = jax.random.PRNGKey(0)
    k_x, k_t, k_p, k_x2, k_t2 = jax.random.split(key, 5)

    raw_params = init_params(k_p)
    prepared = prepare_params(raw_params)

    # Small batch (single grid step).
    B = 16
    x = jax.random.normal(k_x, (B, D_IN), jnp.float32)
    t = jax.random.uniform(k_t, (B, 1), jnp.float32)   # treatment indicator-ish
    y, h_rep = jax.block_until_ready(fcnet_forward(x, t, prepared))

    y_ref, h_rep_ref = _reference_forward(x, t, raw_params)
    assert y.shape == (B, 1) and h_rep.shape == (B, D_H)
    # bf16 weights with f32 accumulation -> relaxed tolerance vs f32 reference.
    assert jnp.allclose(y, y_ref, atol=2e-2, rtol=2e-2)
    assert jnp.allclose(h_rep, h_rep_ref, atol=2e-2, rtol=2e-2)

    # Non-tile-multiple batch (multi-step grid + padding path).
    B2 = 300
    x2 = jax.random.normal(k_x2, (B2, D_IN), jnp.float32)
    t2 = jax.random.uniform(k_t2, (B2, 1), jnp.float32)
    y2, h_rep2 = jax.block_until_ready(fcnet_forward(x2, t2, prepared))

    y2_ref, h_rep2_ref = _reference_forward(x2, t2, raw_params)
    assert y2.shape == (B2, 1) and h_rep2.shape == (B2, D_H)
    assert jnp.allclose(y2, y2_ref, atol=2e-2, rtol=2e-2)
    assert jnp.allclose(h_rep2, h_rep2_ref, atol=2e-2, rtol=2e-2)

    print("KERNEL_OK")
</pallas_src>

<mosaic_0001>
module attributes {stable_mosaic.version = 11 : i64} {
  func.func @_fcnet_kernel(%arg0: i32, %arg1: memref<128x32xf32, #tpu.memory_space<vmem>>, %arg2: memref<32x128xbf16, #tpu.memory_space<vmem>>, %arg3: memref<1x128xf32, #tpu.memory_space<vmem>>, %arg4: memref<4x128x128xbf16, #tpu.memory_space<vmem>>, %arg5: memref<4x1x128xf32, #tpu.memory_space<vmem>>, %arg6: memref<128x256xbf16, #tpu.memory_space<vmem>>, %arg7: memref<1x256xf32, #tpu.memory_space<vmem>>, %arg8: memref<1x128xf32, #tpu.memory_space<vmem>>, %arg9: memref<128x128xf32, #tpu.memory_space<vmem>>) attributes {dimension_semantics = [#tpu.dimension_semantics<parallel>], iteration_bounds = array<i64: 1>, scalar_prefetch = 0 : i64, scratch_operands = 0 : i64, tpu.core_type = #tpu.core_type<tc>, window_params = [{transform_indices = @transform_0, window_bounds = array<i64: 128, 32>}, {pipeline_mode = #tpu.pipeline_mode<synchronous>, transform_indices = @transform_1, window_bounds = array<i64: 32, 128>}, {pipeline_mode = #tpu.pipeline_mode<synchronous>, transform_indices = @transform_2, window_bounds = array<i64: 1, 128>}, {pipeline_mode = #tpu.pipeline_mode<synchronous>, transform_indices = @transform_3, window_bounds = array<i64: 4, 128, 128>}, {pipeline_mode = #tpu.pipeline_mode<synchronous>, transform_indices = @transform_4, window_bounds = array<i64: 4, 1, 128>}, {pipeline_mode = #tpu.pipeline_mode<synchronous>, transform_indices = @transform_5, window_bounds = array<i64: 128, 256>}, {pipeline_mode = #tpu.pipeline_mode<synchronous>, transform_indices = @transform_6, window_bounds = array<i64: 1, 256>}, {pipeline_mode = #tpu.pipeline_mode<synchronous>, transform_indices = @transform_7, window_bounds = array<i64: 1, 128>}, {transform_indices = @transform_8, window_bounds = array<i64: 128, 128>}]} {
    %c0 = arith.constant 0 : index
    %c0_0 = arith.constant 0 : index
    %0 = vector.load %arg1[%c0, %c0_0] : memref<128x32xf32, #tpu.memory_space<vmem>>, vector<128x32xf32>
    %1 = vector.extract_strided_slice %0 {offsets = [0, 25], sizes = [128, 1], strides = [1, 1]} : vector<128x32xf32> to vector<128x1xf32>
    %c0_1 = arith.constant 0 : index
    %c0_2 = arith.constant 0 : index
    %2 = vector.load %arg2[%c0_1, %c0_2] : memref<32x128xbf16, #tpu.memory_space<vmem>>, vector<32x128xbf16>
    %c0_3 = arith.constant 0 : index
    %c0_4 = arith.constant 0 : index
    %3 = vector.load %arg3[%c0_3, %c0_4] : memref<1x128xf32, #tpu.memory_space<vmem>>, vector<1x128xf32>
    %4 = arith.truncf %0 : vector<128x32xf32> to vector<128x32xbf16>
    %cst = arith.constant dense<0.000000e+00> : vector<128x128xf32>
    %5 = tpu.matmul %4, %2, %cst {dimension_numbers = #tpu.dot_dimension_numbers<[1], [0], [0], [1], [0, 0, 1, 1], [], []>} : vector<128x32xbf16>, vector<32x128xbf16>, vector<128x128xf32> -> vector<128x128xf32>
    %6 = vector.broadcast %3 : vector<1x128xf32> to vector<128x128xf32>
    %7 = arith.addf %5, %6 : vector<128x128xf32>
    %cst_5 = arith.constant 0.000000e+00 : f32
    %8 = vector.broadcast %cst_5 : f32 to vector<128x128xf32>
    %9 = arith.maximumf %7, %8 : vector<128x128xf32>
    %c0_6 = arith.constant 0 : index
    %c0_7 = arith.constant 0 : index
    %c0_8 = arith.constant 0 : index
    %10 = vector.load %arg4[%c0_6, %c0_7, %c0_8] : memref<4x128x128xbf16, #tpu.memory_space<vmem>>, vector<1x128x128xbf16>
    %11 = vector.shape_cast %10 : vector<1x128x128xbf16> to vector<128x128xbf16>
    %c0_9 = arith.constant 0 : index
    %c0_10 = arith.constant 0 : index
    %c0_11 = arith.constant 0 : index
    %12 = vector.load %arg5[%c0_9, %c0_10, %c0_11] : memref<4x1x128xf32, #tpu.memory_space<vmem>>, vector<1x1x128xf32>
    %13 = vector.shape_cast %12 : vector<1x1x128xf32> to vector<1x128xf32>
    %14 = arith.truncf %9 : vector<128x128xf32> to vector<128x128xbf16>
    %cst_12 = arith.constant dense<0.000000e+00> : vector<128x128xf32>
    %15 = tpu.matmul %14, %11, %cst_12 {dimension_numbers = #tpu.dot_dimension_numbers<[1], [0], [0], [1], [0, 0, 1, 1], [], []>} : vector<128x128xbf16>, vector<128x128xbf16>, vector<128x128xf32> -> vector<128x128xf32>
    %16 = vector.broadcast %13 : vector<1x128xf32> to vector<128x128xf32>
    %17 = arith.addf %15, %16 : vector<128x128xf32>
    %cst_13 = arith.constant 0.000000e+00 : f32
    %18 = vector.broadcast %cst_13 : f32 to vector<128x128xf32>
    %19 = arith.maximumf %17, %18 : vector<128x128xf32>
    %c0_14 = arith.constant 0 : index
    %c0_15 = arith.constant 0 : index
    %20 = vector.load %arg6[%c0_14, %c0_15] : memref<128x256xbf16, #tpu.memory_space<vmem>>, vector<128x256xbf16>
    %c0_16 = arith.constant 0 : index
    %c0_17 = arith.constant 0 : index
    %21 = vector.load %arg7[%c0_16, %c0_17] : memref<1x256xf32, #tpu.memory_space<vmem>>, vector<1x256xf32>
    %22 = arith.truncf %19 : vector<128x128xf32> to vector<128x128xbf16>
    %cst_18 = arith.constant dense<0.000000e+00> : vector<128x256xf32>
    %23 = tpu.matmul %22, %20, %cst_18 {dimension_numbers = #tpu.dot_dimension_numbers<[1], [0], [0], [1], [0, 0, 1, 1], [], []>} : vector<128x128xbf16>, vector<128x256xbf16>, vector<128x256xf32> -> vector<128x256xf32>
    %24 = vector.broadcast %21 : vector<1x256xf32> to vector<128x256xf32>
    %25 = arith.addf %23, %24 : vector<128x256xf32>
    %26 = vector.extract_strided_slice %25 {offsets = [0, 0], sizes = [128, 128], strides = [1, 1]} : vector<128x256xf32> to vector<128x128xf32>
    %cst_19 = arith.constant 0.000000e+00 : f32
    %27 = vector.broadcast %cst_19 : f32 to vector<128x128xf32>
    %28 = arith.maximumf %26, %27 : vector<128x128xf32>
    %29 = vector.extract_strided_slice %25 {offsets = [0, 128], sizes = [128, 128], strides = [1, 1]} : vector<128x256xf32> to vector<128x128xf32>
    %c0_20 = arith.constant 0 : index
    %c0_21 = arith.constant 0 : index
    %30 = vector.load %arg8[%c0_20, %c0_21] : memref<1x128xf32, #tpu.memory_space<vmem>>, vector<1x128xf32>
    %31 = vector.broadcast %1 : vector<128x1xf32> to vector<128x128xf32>
    %32 = vector.broadcast %30 : vector<1x128xf32> to vector<128x128xf32>
    %33 = arith.mulf %31, %32 : vector<128x128xf32>
    %34 = arith.addf %29, %33 : vector<128x128xf32>
    %cst_22 = arith.constant 0.000000e+00 : f32
    %35 = vector.broadcast %cst_22 : f32 to vector<128x128xf32>
    %36 = arith.maximumf %34, %35 : vector<128x128xf32>
    %c1 = arith.constant 1 : index
    %c0_23 = arith.constant 0 : index
    %c0_24 = arith.constant 0 : index
    %37 = vector.load %arg4[%c1, %c0_23, %c0_24] : memref<4x128x128xbf16, #tpu.memory_space<vmem>>, vector<1x128x128xbf16>
    %38 = vector.shape_cast %37 : vector<1x128x128xbf16> to vector<128x128xbf16>
    %c1_25 = arith.constant 1 : index
    %c0_26 = arith.constant 0 : index
    %c0_27 = arith.constant 0 : index
    %39 = vector.load %arg5[%c1_25, %c0_26, %c0_27] : memref<4x1x128xf32, #tpu.memory_space<vmem>>, vector<1x1x128xf32>
    %40 = vector.shape_cast %39 : vector<1x1x128xf32> to vector<1x128xf32>
    %41 = arith.truncf %36 : vector<128x128xf32> to vector<128x128xbf16>
    %cst_28 = arith.constant dense<0.000000e+00> : vector<128x128xf32>
    %42 = tpu.matmul %41, %38, %cst_28 {dimension_numbers = #tpu.dot_dimension_numbers<[1], [0], [0], [1], [0, 0, 1, 1], [], []>} : vector<128x128xbf16>, vector<128x128xbf16>, vector<128x128xf32> -> vector<128x128xf32>
    %43 = vector.broadcast %40 : vector<1x128xf32> to vector<128x128xf32>
    %44 = arith.addf %42, %43 : vector<128x128xf32>
    %cst_29 = arith.constant 0.000000e+00 : f32
    %45 = vector.broadcast %cst_29 : f32 to vector<128x128xf32>
    %46 = arith.maximumf %44, %45 : vector<128x128xf32>
    %c2 = arith.constant 2 : index
    %c0_30 = arith.constant 0 : index
    %c0_31 = arith.constant 0 : index
    %47 = vector.load %arg4[%c2, %c0_30, %c0_31] : memref<4x128x128xbf16, #tpu.memory_space<vmem>>, vector<1x128x128xbf16>
    %48 = vector.shape_cast %47 : vector<1x128x128xbf16> to vector<128x128xbf16>
    %c2_32 = arith.constant 2 : index
    %c0_33 = arith.constant 0 : index
    %c0_34 = arith.constant 0 : index
    %49 = vector.load %arg5[%c2_32, %c0_33, %c0_34] : memref<4x1x128xf32, #tpu.memory_space<vmem>>, vector<1x1x128xf32>
    %50 = vector.shape_cast %49 : vector<1x1x128xf32> to vector<1x128xf32>
    %51 = arith.truncf %46 : vector<128x128xf32> to vector<128x128xbf16>
    %cst_35 = arith.constant dense<0.000000e+00> : vector<128x128xf32>
    %52 = tpu.matmul %51, %48, %cst_35 {dimension_numbers = #tpu.dot_dimension_numbers<[1], [0], [0], [1], [0, 0, 1, 1], [], []>} : vector<128x128xbf16>, vector<128x128xbf16>, vector<128x128xf32> -> vector<128x128xf32>
    %53 = vector.broadcast %50 : vector<1x128xf32> to vector<128x128xf32>
    %54 = arith.addf %52, %53 : vector<128x128xf32>
    %cst_36 = arith.constant 0.000000e+00 : f32
    %55 = vector.broadcast %cst_36 : f32 to vector<128x128xf32>
    %56 = arith.maximumf %54, %55 : vector<128x128xf32>
    %c3 = arith.constant 3 : index
    %c0_37 = arith.constant 0 : index
    %c0_38 = arith.constant 0 : index
    %57 = vector.load %arg4[%c3, %c0_37, %c0_38] : memref<4x128x128xbf16, #tpu.memory_space<vmem>>, vector<1x128x128xbf16>
    %58 = vector.shape_cast %57 : vector<1x128x128xbf16> to vector<128x128xbf16>
    %c3_39 = arith.constant 3 : index
    %c0_40 = arith.constant 0 : index
    %c0_41 = arith.constant 0 : index
    %59 = vector.load %arg5[%c3_39, %c0_40, %c0_41] : memref<4x1x128xf32, #tpu.memory_space<vmem>>, vector<1x1x128xf32>
    %60 = vector.shape_cast %59 : vector<1x1x128xf32> to vector<1x128xf32>
    %61 = arith.truncf %56 : vector<128x128xf32> to vector<128x128xbf16>
    %cst_42 = arith.constant dense<0.000000e+00> : vector<128x128xf32>
    %62 = tpu.matmul %61, %58, %cst_42 {dimension_numbers = #tpu.dot_dimension_numbers<[1], [0], [0], [1], [0, 0, 1, 1], [], []>} : vector<128x128xbf16>, vector<128x128xbf16>, vector<128x128xf32> -> vector<128x128xf32>
    %63 = vector.broadcast %60 : vector<1x128xf32> to vector<128x128xf32>
    %64 = arith.addf %62, %63 : vector<128x128xf32>
    %65 = arith.addf %28, %64 : vector<128x128xf32>
    %c0_43 = arith.constant 0 : index
    %c0_44 = arith.constant 0 : index
    %66 = vector.load %arg9[%c0_43, %c0_44] : memref<128x128xf32, #tpu.memory_space<vmem>>, vector<128x128xf32>
    tpu.vector_store %arg9[%c0_43, %c0_44], %65 {strides = array<i32>} : memref<128x128xf32, #tpu.memory_space<vmem>>, vector<128x128xf32>,
    return
  }
  func.func @transform_0(%arg0: i32) -> (i32, i32) {
    %c0_i32 = arith.constant 0 : i32
    %c0_i32_0 = arith.constant 0 : i32
    return %arg0, %c0_i32 : i32, i32
  }
  func.func @transform_1(%arg0: i32) -> (i32, i32) {
    %c0_i32 = arith.constant 0 : i32
    %c0_i32_0 = arith.constant 0 : i32
    %c0_i32_1 = arith.constant 0 : i32
    return %c0_i32, %c0_i32_0 : i32, i32
  }
  func.func @transform_2(%arg0: i32) -> (i32, i32) {
    %c0_i32 = arith.constant 0 : i32
    %c0_i32_0 = arith.constant 0 : i32
    %c0_i32_1 = arith.constant 0 : i32
    return %c0_i32, %c0_i32_0 : i32, i32
  }
  func.func @transform_3(%arg0: i32) -> (i32, i32, i32) {
    %c0_i32 = arith.constant 0 : i32
    %c0_i32_0 = arith.constant 0 : i32
    %c0_i32_1 = arith.constant 0 : i32
    %c0_i32_2 = arith.constant 0 : i32
    return %c0_i32, %c0_i32_0, %c0_i32_1 : i32, i32, i32
  }
  func.func @transform_4(%arg0: i32) -> (i32, i32, i32) {
    %c0_i32 = arith.constant 0 : i32
    %c0_i32_0 = arith.constant 0 : i32
    %c0_i32_1 = arith.constant 0 : i32
    %c0_i32_2 = arith.constant 0 : i32
    return %c0_i32, %c0_i32_0, %c0_i32_1 : i32, i32, i32
  }
  func.func @transform_5(%arg0: i32) -> (i32, i32) {
    %c0_i32 = arith.constant 0 : i32
    %c0_i32_0 = arith.constant 0 : i32
    %c0_i32_1 = arith.constant 0 : i32
    return %c0_i32, %c0_i32_0 : i32, i32
  }
  func.func @transform_6(%arg0: i32) -> (i32, i32) {
    %c0_i32 = arith.constant 0 : i32
    %c0_i32_0 = arith.constant 0 : i32
    %c0_i32_1 = arith.constant 0 : i32
    return %c0_i32, %c0_i32_0 : i32, i32
  }
  func.func @transform_7(%arg0: i32) -> (i32, i32) {
    %c0_i32 = arith.constant 0 : i32
    %c0_i32_0 = arith.constant 0 : i32
    %c0_i32_1 = arith.constant 0 : i32
    return %c0_i32, %c0_i32_0 : i32, i32
  }
  func.func @transform_8(%arg0: i32) -> (i32, i32) {
    %c0_i32 = arith.constant 0 : i32
    %c0_i32_0 = arith.constant 0 : i32
    return %arg0, %c0_i32 : i32, i32
  }
}

</mosaic_0001>

<llo_original>
// kernel: tpu_custom_call.1
$region0: #{tpu_custom_call.1}
  #allocation0 [shape = 'u32[]', space=smem, size = 0x4, offset = 0x4, fixed_abs, tag = 'smem constant byte address 0x4 - core index']
  #allocation1 [shape = 'u32[144,128]{1,0:T(1,128)}', space=vmem, size = 0x12000, scoped, tag = 'internal scratch']
  %s0 = inlined_call_operand.vmem [shape: f32[128,32], index: 0, kind: input, shape index: {}]
  %s1 = inlined_call_operand.vmem [shape: bf16[32,128], index: 1, kind: input, shape index: {}]
  %s2 = inlined_call_operand.vmem [shape: f32[1,128], index: 2, kind: input, shape index: {}]
  %s3 = inlined_call_operand.hbm [shape: bf16[4,128,128], index: 3, kind: input, shape index: {}]
  %s4 = inlined_call_operand.vmem [shape: f32[4,1,128], index: 4, kind: input, shape index: {}]
  %s5 = inlined_call_operand.vmem [shape: bf16[128,256], index: 5, kind: input, shape index: {}]
  %s6 = inlined_call_operand.vmem [shape: f32[1,256], index: 6, kind: input, shape index: {}]
  %s7 = inlined_call_operand.vmem [shape: f32[1,128], index: 7, kind: input, shape index: {}]
  %s8 = inlined_call_operand.hbm [shape: f32[128,128], index: 8, kind: output, shape index: {}]
  %s9 = sld [smem:[#allocation0]]
  $region46: #{tpu_custom_call.1} parent=0
    _
  %s11 = ssub.s32 1, %s9
  %s12 = scalar_select 0, %s11, %s9
  $region1: #{tpu_custom_call.1} parent=0
    #allocation2 [shape = 'u8[131072]{0}', space=vmem, size = 0x20000, scoped, tag = 'input window, operand 3, single buffered']
    #allocation3 [shape = 's32[1]{0}', space=sflag, size = 0x4, scoped, tag = 'scoped memory for tpu_custom_call.1']
    #allocation4 [shape = 's32[1]{0}', space=sflag, size = 0x4, scoped, tag = 'scoped memory for tpu_custom_call.1']
    #allocation5 [shape = 'u8[65536]{0}', space=vmem, size = 0x10000, scoped, tag = 'output window, operand 0, single buffered']
    %13 = vsyncpa [#allocation3], 0
    %14 = vsyncpa [#allocation4], 0
    // Predicated region
    $region2: #{tpu_custom_call.1} parent=1 // pred_check
      _
    $region3: #{tpu_custom_call.1} parent=1 // pred_check_branch
      %16 = sbr.rel (0) target = $region5
    $region4: #{tpu_custom_call.1} parent=1 // pred_region
      _
    $region5: #{tpu_custom_call.1} parent=1 // pred_fallthru
      _
    // Predicated region
    $region6: #{tpu_custom_call.1} parent=1 // pred_check
      _
    $region7: #{tpu_custom_call.1} parent=1 // pred_check_branch
      %18 = sbr.rel (0) target = $region9
    $region8: #{tpu_custom_call.1} parent=1 // pred_region
      _
    $region9: #{tpu_custom_call.1} parent=1 // pred_fallthru
      _
    // Predicated region
    $region10: #{tpu_custom_call.1} parent=1 // pred_check
      _
    $region11: #{tpu_custom_call.1} parent=1 // pred_check_branch
      %20 = sbr.rel (0) target = $region13
    $region12: #{tpu_custom_call.1} parent=1 // pred_region
      _
    $region13: #{tpu_custom_call.1} parent=1 // pred_fallthru
      _
    // Predicated region
    $region14: #{tpu_custom_call.1} parent=1 // pred_check
      _
    $region15: #{tpu_custom_call.1} parent=1 // pred_check_branch
      %22 = sbr.rel (0) target = $region17
    $region16: #{tpu_custom_call.1} parent=1 // pred_region
      %s24 = ssub.s32 4096, 4096
      %25 = vsyncadd [#allocation3], %s24
      %s26 = sshll.u32 [#allocation2], 4
      %s27 = int_to_ptr.vmem [resolvable:$true] %s26
      %32 = dma.hbm_to_vmem [thread:$0]  %s3, 4096, %s27, [#allocation3], 64, 64, 4
    $region17: #{tpu_custom_call.1} parent=1 // pred_fallthru
      _
    // Predicated region
    $region18: #{tpu_custom_call.1} parent=1 // pred_check
      _
    $region19: #{tpu_custom_call.1} parent=1 // pred_check_branch
      %34 = sbr.rel (0) target = $region21
    $region20: #{tpu_custom_call.1} parent=1 // pred_region
      _
    $region21: #{tpu_custom_call.1} parent=1 // pred_fallthru
      _
    // Predicated region
    $region22: #{tpu_custom_call.1} parent=1 // pred_check
      _
    $region23: #{tpu_custom_call.1} parent=1 // pred_check_branch
      %36 = sbr.rel (0) target = $region25
    $region24: #{tpu_custom_call.1} parent=1 // pred_region
      _
    $region25: #{tpu_custom_call.1} parent=1 // pred_fallthru
      _
    // Predicated region
    $region26: #{tpu_custom_call.1} parent=1 // pred_check
      _
    $region27: #{tpu_custom_call.1} parent=1 // pred_check_branch
      %38 = sbr.rel (0) target = $region29
    $region28: #{tpu_custom_call.1} parent=1 // pred_region
      _
    $region29: #{tpu_custom_call.1} parent=1 // pred_fallthru
      _
    // Predicated region
    $region30: #{tpu_custom_call.1} parent=1 // pred_check
      _
    $region31: #{tpu_custom_call.1} parent=1 // pred_check_branch
      %40 = sbr.rel (0) target = $region33
    $region32: #{tpu_custom_call.1} parent=1 // pred_region
      _
    $region33: #{tpu_custom_call.1} parent=1 // pred_fallthru
      _
    // Predicated region
    $region34: #{tpu_custom_call.1} parent=1 // pred_check
      _
    $region35: #{tpu_custom_call.1} parent=1 // pred_check_branch
      %42 = sbr.rel (0) target = $region37
    $region36: #{tpu_custom_call.1} parent=1 // pred_region
      %43 = dma.done [#allocation3], 4096
    $region37: #{tpu_custom_call.1} parent=1 // pred_fallthru
      _
    %v45 = vld [vmem:[%s0] sm:$0xff]
    %v46 = vld [vmem:[%s0 + $0x8] sm:$0xff]
    %v47 = vld [vmem:[%s0 + $0x10] sm:$0xff]
    %v48 = vld [vmem:[%s0 + $0x18] sm:$0xff]
    %v49 = vld [vmem:[%s0 + $0x20] sm:$0xff]
    %v50 = vld [vmem:[%s0 + $0x28] sm:$0xff]
    %v51 = vld [vmem:[%s0 + $0x30] sm:$0xff]
    %v52 = vld [vmem:[%s0 + $0x38] sm:$0xff]
    %v53 = vld [vmem:[%s0 + $0x40] sm:$0xff]
    %v54 = vld [vmem:[%s0 + $0x48] sm:$0xff]
    %v55 = vld [vmem:[%s0 + $0x50] sm:$0xff]
    %v56 = vld [vmem:[%s0 + $0x58] sm:$0xff]
    %v57 = vld [vmem:[%s0 + $0x60] sm:$0xff]
    %v58 = vld [vmem:[%s0 + $0x68] sm:$0xff]
    %v59 = vld [vmem:[%s0 + $0x70] sm:$0xff]
    %v60 = vld [vmem:[%s0 + $0x78] sm:$0xff]
    %v61 = vld [vmem:[%s1] sm:$0xf]
    %v62 = vld [vmem:[%s1 + $0x4] sm:$0xf]
    %v63 = vld [vmem:[%s1 + $0x8] sm:$0xf]
    %v64 = vld [vmem:[%s1 + $0xc] sm:$0xf]
    %v65 = vld [vmem:[%s2] sm:$0x1]
    %v66 = vpack.c.bf16 %v46, %v45
    %v67 = vpack.c.bf16 %v48, %v47
    %v68 = vpack.c.bf16 %v50, %v49
    %v69 = vpack.c.bf16 %v52, %v51
    %v70 = vpack.c.bf16 %v54, %v53
    %v71 = vpack.c.bf16 %v56, %v55
    %v72 = vpack.c.bf16 %v58, %v57
    %v73 = vpack.c.bf16 %v60, %v59
    %v75 = vlaneseq
    %v76 = vshrl.u32 %v75, 7
    %v77 = vsub.s32 0, %v76
    %v78 = vrot.slane %v65, %v77
    %v84 = vunpack.c.l.b16 %v61
    %v85 = vunpack.c.l.b16 %v62
    %v86 = vunpack.c.l.b16 %v63
    %v87 = vunpack.c.l.b16 %v64
    %v88 = vpack.c.b16 %v85, %v84
    %v89 = vpack.c.b16 %v87, %v86
    %vm92 = vcmask 261120
    %v94 = vsel %vm92, %v66, 0
    %v97 = vsel %vm92, %v67, 0
    %v100 = vsel %vm92, %v68, 0
    %v103 = vsel %vm92, %v69, 0
    %v106 = vsel %vm92, %v70, 0
    %v109 = vsel %vm92, %v71, 0
    %v112 = vsel %vm92, %v72, 0
    %v115 = vsel %vm92, %v73, 0
    %117 = vmatprep.subr.bf16.mxu0 0
    %118 = vmatpush1.bf16.msra.mxu0 %v88
    %119 = vmatprep.subr.bf16.mxu0 0
    %120 = vmatpush1.bf16.msra.mxu0 %v89
    %121 = vmatprep.subr.bf16.mxu0 0
    %122 = vmatpush1.bf16.msra.mxu0 0
    %123 = vmatprep.subr.bf16.mxu0 0
    %124 = vmatpush1.bf16.msra.mxu0 0
    %125 = vmatprep.subr.bf16.mxu0 0
    %126 = vmatpush1.bf16.msra.mxu0 0
    %127 = vmatprep.subr.bf16.mxu0 0
    %128 = vmatpush1.bf16.msra.mxu0 0
    %129 = vmatprep.subr.bf16.mxu0 0
    %130 = vmatpush1.bf16.msra.mxu0 0
    %131 = vmatprep.subr.bf16.mxu0 0
    %132 = vmatpush1.bf16.msra.mxu0 0
    %133 = vmatprep.subr.bf16.mxu0 0
    %134 = vmatpush1.bf16.msra.mxu0 0
    %135 = vmatprep.subr.bf16.mxu0 0
    %136 = vmatpush1.bf16.msra.mxu0 0
    %137 = vmatprep.subr.bf16.mxu0 0
    %138 = vmatpush1.bf16.msra.mxu0 0
    %139 = vmatprep.subr.bf16.mxu0 0
    %140 = vmatpush1.bf16.msra.mxu0 0
    %141 = vmatprep.subr.bf16.mxu0 0
    %142 = vmatpush1.bf16.msra.mxu0 0
    %143 = vmatprep.subr.bf16.mxu0 0
    %144 = vmatpush1.bf16.msra.mxu0 0
    %145 = vmatprep.subr.bf16.mxu0 0
    %146 = vmatpush1.bf16.msra.mxu0 0
    %147 = vmatprep.subr.bf16.mxu0 0
    %148 = vmatpush1.bf16.msra.mxu0 0
    %149 = vmatprep.mubr.bf16.mxu0 0
    %150 = vmatmul.mubr.bf16.gmra.mrb[0].mxu0 %v94
    %v151 = vpop.f32.mrb[0].mxu0
    %v152 = vadd.f32 %v78, %v151
    %v153 = vpop.f32.mrb[0].mxu0
    %v154 = vpop.f32.mrb[0].mxu0
    %v155 = vadd.f32 %v78, %v154
    %v156 = vpop.f32.mrb[0].mxu0
    %157 = vmatprep.mubr.bf16.mxu0 0
    %158 = vmatmul.mubr.bf16.gmra.mrb[0].mxu0 %v97
    %v159 = vpop.f32.mrb[0].mxu0
    %v160 = vadd.f32 %v78, %v159
    %v161 = vpop.f32.mrb[0].mxu0
    %v162 = vpop.f32.mrb[0].mxu0
    %v163 = vadd.f32 %v78, %v162
    %v164 = vpop.f32.mrb[0].mxu0
    %165 = vmatprep.mubr.bf16.mxu0 0
    %166 = vmatmul.mubr.bf16.gmra.mrb[0].mxu0 %v100
    %v167 = vpop.f32.mrb[0].mxu0
    %v168 = vadd.f32 %v78, %v167
    %v169 = vpop.f32.mrb[0].mxu0
    %v170 = vpop.f32.mrb[0].mxu0
    %v171 = vadd.f32 %v78, %v170
    %v172 = vpop.f32.mrb[0].mxu0
    %173 = vmatprep.mubr.bf16.mxu0 0
    %174 = vmatmul.mubr.bf16.gmra.mrb[0].mxu0 %v103
    %v175 = vpop.f32.mrb[0].mxu0
    %v176 = vadd.f32 %v78, %v175
    %v177 = vpop.f32.mrb[0].mxu0
    %v178 = vpop.f32.mrb[0].mxu0
    %v179 = vadd.f32 %v78, %v178
    %v180 = vpop.f32.mrb[0].mxu0
    %181 = vmatprep.mubr.bf16.mxu0 0
    %182 = vmatmul.mubr.bf16.gmra.mrb[0].mxu0 %v106
    %v183 = vpop.f32.mrb[0].mxu0
    %v184 = vadd.f32 %v78, %v183
    %v185 = vpop.f32.mrb[0].mxu0
    %v186 = vpop.f32.mrb[0].mxu0
    %v187 = vadd.f32 %v78, %v186
    %v188 = vpop.f32.mrb[0].mxu0
    %189 = vmatprep.mubr.bf16.mxu0 0
    %190 = vmatmul.mubr.bf16.gmra.mrb[0].mxu0 %v109
    %v191 = vpop.f32.mrb[0].mxu0
    %v192 = vadd.f32 %v78, %v191
    %v193 = vpop.f32.mrb[0].mxu0
    %v194 = vpop.f32.mrb[0].mxu0
    %v195 = vadd.f32 %v78, %v194
    %v196 = vpop.f32.mrb[0].mxu0
    %197 = vmatprep.mubr.bf16.mxu0 0
    %198 = vmatmul.mubr.bf16.gmra.mrb[0].mxu0 %v112
    %v199 = vpop.f32.mrb[0].mxu0
    %v200 = vadd.f32 %v78, %v199
    %v201 = vpop.f32.mrb[0].mxu0
    %v202 = vpop.f32.mrb[0].mxu0
    %v203 = vadd.f32 %v78, %v202
    %v204 = vpop.f32.mrb[0].mxu0
    %205 = vmatprep.mubr.bf16.mxu0 0
    %206 = vmatmul.mubr.bf16.gmra.mrb[0].mxu0 %v115
    %v207 = vpop.f32.mrb[0].mxu0
    %v208 = vadd.f32 %v78, %v207
    %v209 = vpop.f32.mrb[0].mxu0
    %v210 = vpop.f32.mrb[0].mxu0
    %v211 = vadd.f32 %v78, %v210
    %v212 = vpop.f32.mrb[0].mxu0
    %213 = vdwg.mxu0
    %v214 = vmax.f32 %v152, 0.0
    %v215 = vmax.f32 %v155, 0.0
    %v216 = vmax.f32 %v160, 0.0
    %v217 = vmax.f32 %v163, 0.0
    %v218 = vmax.f32 %v168, 0.0
    %v219 = vmax.f32 %v171, 0.0
    %v220 = vmax.f32 %v176, 0.0
    %v221 = vmax.f32 %v179, 0.0
    %v222 = vmax.f32 %v184, 0.0
    %v223 = vmax.f32 %v187, 0.0
    %v224 = vmax.f32 %v192, 0.0
    %v225 = vmax.f32 %v195, 0.0
    %v226 = vmax.f32 %v200, 0.0
    %v227 = vmax.f32 %v203, 0.0
    %v228 = vmax.f32 %v208, 0.0
    %v229 = vmax.f32 %v211, 0.0
    %v230 = vld [vmem:[#allocation2] sm:$0xf]
    %v231 = vld [vmem:[#allocation2 + $0x4] sm:$0xf]
    %v232 = vld [vmem:[#allocation2 + $0x8] sm:$0xf]
    %v233 = vld [vmem:[#allocation2 + $0xc] sm:$0xf]
    %v234 = vld [vmem:[#allocation2 + $0x10] sm:$0xf]
    %v235 = vld [vmem:[#allocation2 + $0x14] sm:$0xf]
    %v236 = vld [vmem:[#allocation2 + $0x18] sm:$0xf]
    %v237 = vld [vmem:[#allocation2 + $0x1c] sm:$0xf]
    %v238 = vld [vmem:[#allocation2 + $0x20] sm:$0xf]
    %v239 = vld [vmem:[#allocation2 + $0x24] sm:$0xf]
    %v240 = vld [vmem:[#allocation2 + $0x28] sm:$0xf]
    %v241 = vld [vmem:[#allocation2 + $0x2c] sm:$0xf]
    %v242 = vld [vmem:[#allocation2 + $0x30] sm:$0xf]
    %v243 = vld [vmem:[#allocation2 + $0x34] sm:$0xf]
    %v244 = vld [vmem:[#allocation2 + $0x38] sm:$0xf]
    %v245 = vld [vmem:[#allocation2 + $0x3c] sm:$0xf]
    %v246 = vld [vmem:[%s4] sm:$0x1]
    %v247 = vpack.c.bf16 %v215, %v214
    %v248 = vpack.c.bf16 %v217, %v216
    %v249 = vpack.c.bf16 %v219, %v218
    %v250 = vpack.c.bf16 %v221, %v220
    %v251 = vpack.c.bf16 %v223, %v222
    %v252 = vpack.c.bf16 %v225, %v224
    %v253 = vpack.c.bf16 %v227, %v226
    %v254 = vpack.c.bf16 %v229, %v228
    %v256 = vlaneseq
    %v257 = vshrl.u32 %v256, 7
    %v258 = vsub.s32 0, %v257
    %v259 = vrot.slane %v246, %v258
    %v277 = vunpack.c.l.b16 %v230
    %v278 = vunpack.c.l.b16 %v231
    %v279 = vunpack.c.l.b16 %v232
    %v280 = vunpack.c.l.b16 %v233
    %v281 = vunpack.c.l.b16 %v234
    %v282 = vunpack.c.l.b16 %v235
    %v283 = vunpack.c.l.b16 %v236
    %v284 = vunpack.c.l.b16 %v237
    %v285 = vunpack.c.l.b16 %v238
    %v286 = vunpack.c.l.b16 %v239
    %v287 = vunpack.c.l.b16 %v240
    %v288 = vunpack.c.l.b16 %v241
    %v289 = vunpack.c.l.b16 %v242
    %v290 = vunpack.c.l.b16 %v243
    %v291 = vunpack.c.l.b16 %v244
    %v292 = vunpack.c.l.b16 %v245
    %v293 = vpack.c.b16 %v278, %v277
    %v294 = vpack.c.b16 %v280, %v279
    %v295 = vpack.c.b16 %v282, %v281
    %v296 = vpack.c.b16 %v284, %v283
    %v297 = vpack.c.b16 %v286, %v285
    %v298 = vpack.c.b16 %v288, %v287
    %v299 = vpack.c.b16 %v290, %v289
    %v300 = vpack.c.b16 %v292, %v291
    %309 = vmatprep.subr.bf16.mxu0 0
    %310 = vmatpush1.bf16.msra.mxu0 %v293
    %311 = vmatprep.subr.bf16.mxu0 0
    %312 = vmatpush1.bf16.msra.mxu0 %v294
    %313 = vmatprep.subr.bf16.mxu0 0
    %314 = vmatpush1.bf16.msra.mxu0 %v295
    %315 = vmatprep.subr.bf16.mxu0 0
    %316 = vmatpush1.bf16.msra.mxu0 %v296
    %317 = vmatprep.subr.bf16.mxu0 0
    %318 = vmatpush1.bf16.msra.mxu0 %v297
    %319 = vmatprep.subr.bf16.mxu0 0
    %320 = vmatpush1.bf16.msra.mxu0 %v298
    %321 = vmatprep.subr.bf16.mxu0 0
    %322 = vmatpush1.bf16.msra.mxu0 %v299
    %323 = vmatprep.subr.bf16.mxu0 0
    %324 = vmatpush1.bf16.msra.mxu0 %v300
    %325 = vmatprep.subr.bf16.mxu0 0
    %326 = vmatpush1.bf16.msra.mxu0 0
    %327 = vmatprep.subr.bf16.mxu0 0
    %328 = vmatpush1.bf16.msra.mxu0 0
    %329 = vmatprep.subr.bf16.mxu0 0
    %330 = vmatpush1.bf16.msra.mxu0 0
    %331 = vmatprep.subr.bf16.mxu0 0
    %332 = vmatpush1.bf16.msra.mxu0 0
    %333 = vmatprep.subr.bf16.mxu0 0
    %334 = vmatpush1.bf16.msra.mxu0 0
    %335 = vmatprep.subr.bf16.mxu0 0
    %336 = vmatpush1.bf16.msra.mxu0 0
    %337 = vmatprep.subr.bf16.mxu0 0
    %338 = vmatpush1.bf16.msra.mxu0 0
    %339 = vmatprep.subr.bf16.mxu0 0
    %340 = vmatpush1.bf16.msra.mxu0 0
    %341 = vmatprep.mubr.bf16.mxu0 0
    %342 = vmatmul.mubr.bf16.gmra.mrb[0].mxu0 %v247
    %v343 = vpop.f32.mrb[0].mxu0
    %v344 = vadd.f32 %v259, %v343
    %v345 = vpop.f32.mrb[0].mxu0
    %v346 = vpop.f32.mrb[0].mxu0
    %v347 = vadd.f32 %v259, %v346
    %v348 = vpop.f32.mrb[0].mxu0
    %349 = vmatprep.mubr.bf16.mxu0 0
    %350 = vmatmul.mubr.bf16.gmra.mrb[0].mxu0 %v248
    %v351 = vpop.f32.mrb[0].mxu0
    %v352 = vadd.f32 %v259, %v351
    %v353 = vpop.f32.mrb[0].mxu0
    %v354 = vpop.f32.mrb[0].mxu0
    %v355 = vadd.f32 %v259, %v354
    %v356 = vpop.f32.mrb[0].mxu0
    %357 = vmatprep.mubr.bf16.mxu0 0
    %358 = vmatmul.mubr.bf16.gmra.mrb[0].mxu0 %v249
    %v359 = vpop.f32.mrb[0].mxu0
    %v360 = vadd.f32 %v259, %v359
    %v361 = vpop.f32.mrb[0].mxu0
    %v362 = vpop.f32.mrb[0].mxu0
    %v363 = vadd.f32 %v259, %v362
    %v364 = vpop.f32.mrb[0].mxu0
    %365 = vmatprep.mubr.bf16.mxu0 0
    %366 = vmatmul.mubr.bf16.gmra.mrb[0].mxu0 %v250
    %v367 = vpop.f32.mrb[0].mxu0
    %v368 = vadd.f32 %v259, %v367
    %v369 = vpop.f32.mrb[0].mxu0
    %v370 = vpop.f32.mrb[0].mxu0
    %v371 = vadd.f32 %v259, %v370
    %v372 = vpop.f32.mrb[0].mxu0
    %373 = vmatprep.mubr.bf16.mxu0 0
    %374 = vmatmul.mubr.bf16.gmra.mrb[0].mxu0 %v251
    %v375 = vpop.f32.mrb[0].mxu0
    %v376 = vadd.f32 %v259, %v375
    %v377 = vpop.f32.mrb[0].mxu0
    %v378 = vpop.f32.mrb[0].mxu0
    %v379 = vadd.f32 %v259, %v378
    %v380 = vpop.f32.mrb[0].mxu0
    %381 = vmatprep.mubr.bf16.mxu0 0
    %382 = vmatmul.mubr.bf16.gmra.mrb[0].mxu0 %v252
    %v383 = vpop.f32.mrb[0].mxu0
    %v384 = vadd.f32 %v259, %v383
    %v385 = vpop.f32.mrb[0].mxu0
    %v386 = vpop.f32.mrb[0].mxu0
    %v387 = vadd.f32 %v259, %v386
    %v388 = vpop.f32.mrb[0].mxu0
    %389 = vmatprep.mubr.bf16.mxu0 0
    %390 = vmatmul.mubr.bf16.gmra.mrb[0].mxu0 %v253
    %v391 = vpop.f32.mrb[0].mxu0
    %v392 = vadd.f32 %v259, %v391
    %v393 = vpop.f32.mrb[0].mxu0
    %v394 = vpop.f32.mrb[0].mxu0
    %v395 = vadd.f32 %v259, %v394
    %v396 = vpop.f32.mrb[0].mxu0
    %397 = vmatprep.mubr.bf16.mxu0 0
    %398 = vmatmul.mubr.bf16.gmra.mrb[0].mxu0 %v254
    %v399 = vpop.f32.mrb[0].mxu0
    %v400 = vadd.f32 %v259, %v399
    %v401 = vpop.f32.mrb[0].mxu0
    %v402 = vpop.f32.mrb[0].mxu0
    %v403 = vadd.f32 %v259, %v402
    %v404 = vpop.f32.mrb[0].mxu0
    %405 = vdwg.mxu0
    %v406 = vmax.f32 %v344, 0.0
    %v407 = vmax.f32 %v347, 0.0
    %v408 = vmax.f32 %v352, 0.0
    %v409 = vmax.f32 %v355, 0.0
    %v410 = vmax.f32 %v360, 0.0
    %v411 = vmax.f32 %v363, 0.0
    %v412 = vmax.f32 %v368, 0.0
    %v413 = vmax.f32 %v371, 0.0
    %v414 = vmax.f32 %v376, 0.0
    %v415 = vmax.f32 %v379, 0.0
    %v416 = vmax.f32 %v384, 0.0
    %v417 = vmax.f32 %v387, 0.0
    %v418 = vmax.f32 %v392, 0.0
    %v419 = vmax.f32 %v395, 0.0
    %v420 = vmax.f32 %v400, 0.0
    %v421 = vmax.f32 %v403, 0.0
    %v422 = vld [vmem:[%s5] sm:$0xff]
    %v423 = vld [vmem:[%s5 + $0x8] sm:$0xff]
    %v424 = vld [vmem:[%s5 + $0x10] sm:$0xff]
    %v425 = vld [vmem:[%s5 + $0x18] sm:$0xff]
    %v426 = vld [vmem:[%s5 + $0x20] sm:$0xff]
    %v427 = vld [vmem:[%s5 + $0x28] sm:$0xff]
    %v428 = vld [vmem:[%s5 + $0x30] sm:$0xff]
    %v429 = vld [vmem:[%s5 + $0x38] sm:$0xff]
    %v430 = vld [vmem:[%s5 + $0x40] sm:$0xff]
    %v431 = vld [vmem:[%s5 + $0x48] sm:$0xff]
    %v432 = vld [vmem:[%s5 + $0x50] sm:$0xff]
    %v433 = vld [vmem:[%s5 + $0x58] sm:$0xff]
    %v434 = vld [vmem:[%s5 + $0x60] sm:$0xff]
    %v435 = vld [vmem:[%s5 + $0x68] sm:$0xff]
    %v436 = vld [vmem:[%s5 + $0x70] sm:$0xff]
    %v437 = vld [vmem:[%s5 + $0x78] sm:$0xff]
    %v438 = vld [vmem:[%s6] sm:$0x3]
    %v439 = vpack.c.bf16 %v407, %v406
    %v440 = vpack.c.bf16 %v409, %v408
    %v441 = vpack.c.bf16 %v411, %v410
    %v442 = vpack.c.bf16 %v413, %v412
    %v443 = vpack.c.bf16 %v415, %v414
    %v444 = vpack.c.bf16 %v417, %v416
    %v445 = vpack.c.bf16 %v419, %v418
    %v446 = vpack.c.bf16 %v421, %v420
    %v448 = vlaneseq
    %v449 = vshrl.u32 %v448, 7
    %v450 = vsub.s32 0, %v449
    %v451 = vrot.slane %v438, %v450
    %v452 = vlaneseq
    %v453 = vshrl.u32 %v452, 7
    %v454 = vsub.s32 1, %v453
    %v455 = vrot.slane %v438, %v454
    %v474 = vunpack.c.l.b16 %v422
    %v475 = vunpack.c.h.b16 %v422
    %v476 = vunpack.c.l.b16 %v423
    %v477 = vunpack.c.h.b16 %v423
    %v478 = vunpack.c.l.b16 %v424
    %v479 = vunpack.c.h.b16 %v424
    %v480 = vunpack.c.l.b16 %v425
    %v481 = vunpack.c.h.b16 %v425
    %v482 = vunpack.c.l.b16 %v426
    %v483 = vunpack.c.h.b16 %v426
    %v484 = vunpack.c.l.b16 %v427
    %v485 = vunpack.c.h.b16 %v427
    %v486 = vunpack.c.l.b16 %v428
    %v487 = vunpack.c.h.b16 %v428
    %v488 = vunpack.c.l.b16 %v429
    %v489 = vunpack.c.h.b16 %v429
    %v490 = vunpack.c.l.b16 %v430
    %v491 = vunpack.c.h.b16 %v430
    %v492 = vunpack.c.l.b16 %v431
    %v493 = vunpack.c.h.b16 %v431
    %v494 = vunpack.c.l.b16 %v432
    %v495 = vunpack.c.h.b16 %v432
    %v496 = vunpack.c.l.b16 %v433
    %v497 = vunpack.c.h.b16 %v433
    %v498 = vunpack.c.l.b16 %v434
    %v499 = vunpack.c.h.b16 %v434
    %v500 = vunpack.c.l.b16 %v435
    %v501 = vunpack.c.h.b16 %v435
    %v502 = vunpack.c.l.b16 %v436
    %v503 = vunpack.c.h.b16 %v436
    %v504 = vunpack.c.l.b16 %v437
    %v505 = vunpack.c.h.b16 %v437
    %v506 = vpack.c.b16 %v476, %v474
    %v507 = vpack.c.b16 %v477, %v475
    %v508 = vpack.c.b16 %v480, %v478
    %v509 = vpack.c.b16 %v481, %v479
    %v510 = vpack.c.b16 %v484, %v482
    %v511 = vpack.c.b16 %v485, %v483
    %v512 = vpack.c.b16 %v488, %v486
    %v513 = vpack.c.b16 %v489, %v487
    %v514 = vpack.c.b16 %v492, %v490
    %v515 = vpack.c.b16 %v493, %v491
    %v516 = vpack.c.b16 %v496, %v494
    %v517 = vpack.c.b16 %v497, %v495
    %v518 = vpack.c.b16 %v500, %v498
    %v519 = vpack.c.b16 %v501, %v499
    %v520 = vpack.c.b16 %v504, %v502
    %v521 = vpack.c.b16 %v505, %v503
    %538 = vmatprep.subr.bf16.mxu0 %v507
    %539 = vmatpush1.bf16.msra.mxu0 %v506
    %540 = vmatprep.subr.bf16.mxu0 %v509
    %541 = vmatpush1.bf16.msra.mxu0 %v508
    %542 = vmatprep.subr.bf16.mxu0 %v511
    %543 = vmatpush1.bf16.msra.mxu0 %v510
    %544 = vmatprep.subr.bf16.mxu0 %v513
    %545 = vmatpush1.bf16.msra.mxu0 %v512
    %546 = vmatprep.subr.bf16.mxu0 %v515
    %547 = vmatpush1.bf16.msra.mxu0 %v514
    %548 = vmatprep.subr.bf16.mxu0 %v517
    %549 = vmatpush1.bf16.msra.mxu0 %v516
    %550 = vmatprep.subr.bf16.mxu0 %v519
    %551 = vmatpush1.bf16.msra.mxu0 %v518
    %552 = vmatprep.subr.bf16.mxu0 %v521
    %553 = vmatpush1.bf16.msra.mxu0 %v520
    %554 = vmatprep.subr.bf16.mxu0 0
    %555 = vmatpush1.bf16.msra.mxu0 0
    %556 = vmatprep.subr.bf16.mxu0 0
    %557 = vmatpush1.bf16.msra.mxu0 0
    %558 = vmatprep.subr.bf16.mxu0 0
    %559 = vmatpush1.bf16.msra.mxu0 0
    %560 = vmatprep.subr.bf16.mxu0 0
    %561 = vmatpush1.bf16.msra.mxu0 0
    %562 = vmatprep.subr.bf16.mxu0 0
    %563 = vmatpush1.bf16.msra.mxu0 0
    %564 = vmatprep.subr.bf16.mxu0 0
    %565 = vmatpush1.bf16.msra.mxu0 0
    %566 = vmatprep.subr.bf16.mxu0 0
    %567 = vmatpush1.bf16.msra.mxu0 0
    %568 = vmatprep.subr.bf16.mxu0 0
    %569 = vmatpush1.bf16.msra.mxu0 0
    %570 = vmatprep.mubr.bf16.mxu0 0
    %571 = vmatmul.mubr.bf16.gmra.mrb[0].mxu0 %v439
    %v572 = vpop.f32.mrb[0].mxu0
    %v573 = vadd.f32 %v451, %v572
    %v574 = vpop.f32.mrb[0].mxu0
    %v575 = vadd.f32 %v455, %v574
    %v576 = vpop.f32.mrb[0].mxu0
    %v577 = vadd.f32 %v451, %v576
    %v578 = vpop.f32.mrb[0].mxu0
    %v579 = vadd.f32 %v455, %v578
    %580 = vmatprep.mubr.bf16.mxu0 0
    %581 = vmatmul.mubr.bf16.gmra.mrb[0].mxu0 %v440
    %v582 = vpop.f32.mrb[0].mxu0
    %v583 = vadd.f32 %v451, %v582
    %v584 = vpop.f32.mrb[0].mxu0
    %v585 = vadd.f32 %v455, %v584
    %v586 = vpop.f32.mrb[0].mxu0
    %v587 = vadd.f32 %v451, %v586
    %v588 = vpop.f32.mrb[0].mxu0
    %v589 = vadd.f32 %v455, %v588
    %590 = vmatprep.mubr.bf16.mxu0 0
    %591 = vmatmul.mubr.bf16.gmra.mrb[0].mxu0 %v441
    %v592 = vpop.f32.mrb[0].mxu0
    %v593 = vadd.f32 %v451, %v592
    %v594 = vpop.f32.mrb[0].mxu0
    %v595 = vadd.f32 %v455, %v594
    %v596 = vpop.f32.mrb[0].mxu0
    %v597 = vadd.f32 %v451, %v596
    %v598 = vpop.f32.mrb[0].mxu0
    %v599 = vadd.f32 %v455, %v598
    %600 = vmatprep.mubr.bf16.mxu0 0
    %601 = vmatmul.mubr.bf16.gmra.mrb[0].mxu0 %v442
    %v602 = vpop.f32.mrb[0].mxu0
    %v603 = vadd.f32 %v451, %v602
    %v604 = vpop.f32.mrb[0].mxu0
    %v605 = vadd.f32 %v455, %v604
    %v606 = vpop.f32.mrb[0].mxu0
    %v607 = vadd.f32 %v451, %v606
    %v608 = vpop.f32.mrb[0].mxu0
    %v609 = vadd.f32 %v455, %v608
    %610 = vmatprep.mubr.bf16.mxu0 0
    %611 = vmatmul.mubr.bf16.gmra.mrb[0].mxu0 %v443
    %v612 = vpop.f32.mrb[0].mxu0
    %v613 = vadd.f32 %v451, %v612
    %v614 = vpop.f32.mrb[0].mxu0
    %v615 = vadd.f32 %v455, %v614
    %v616 = vpop.f32.mrb[0].mxu0
    %v617 = vadd.f32 %v451, %v616
    %v618 = vpop.f32.mrb[0].mxu0
    %v619 = vadd.f32 %v455, %v618
    %620 = vmatprep.mubr.bf16.mxu0 0
    %621 = vmatmul.mubr.bf16.gmra.mrb[0].mxu0 %v444
    %v622 = vpop.f32.mrb[0].mxu0
    %v623 = vadd.f32 %v451, %v622
    %v624 = vpop.f32.mrb[0].mxu0
    %v625 = vadd.f32 %v455, %v624
    %v626 = vpop.f32.mrb[0].mxu0
    %v627 = vadd.f32 %v451, %v626
    %v628 = vpop.f32.mrb[0].mxu0
    %v629 = vadd.f32 %v455, %v628
    %630 = vmatprep.mubr.bf16.mxu0 0
    %631 = vmatmul.mubr.bf16.gmra.mrb[0].mxu0 %v445
    %v632 = vpop.f32.mrb[0].mxu0
    %v633 = vadd.f32 %v451, %v632
    %v634 = vpop.f32.mrb[0].mxu0
    %v635 = vadd.f32 %v455, %v634
    %v636 = vpop.f32.mrb[0].mxu0
    %v637 = vadd.f32 %v451, %v636
    %v638 = vpop.f32.mrb[0].mxu0
    %v639 = vadd.f32 %v455, %v638
    %640 = vmatprep.mubr.bf16.mxu0 0
    %641 = vmatmul.mubr.bf16.gmra.mrb[0].mxu0 %v446
    %v642 = vpop.f32.mrb[0].mxu0
    %v643 = vadd.f32 %v451, %v642
    %v644 = vpop.f32.mrb[0].mxu0
    %v645 = vadd.f32 %v455, %v644
    %v646 = vpop.f32.mrb[0].mxu0
    %v647 = vadd.f32 %v451, %v646
    %v648 = vpop.f32.mrb[0].mxu0
    %v649 = vadd.f32 %v455, %v648
    %650 = vdwg.mxu0
    %v651 = vmax.f32 %v573, 0.0
    %v652 = vmax.f32 %v577, 0.0
    %v653 = vmax.f32 %v583, 0.0
    %v654 = vmax.f32 %v587, 0.0
    %v655 = vmax.f32 %v593, 0.0
    %v656 = vmax.f32 %v597, 0.0
    %v657 = vmax.f32 %v603, 0.0
    %v658 = vmax.f32 %v607, 0.0
    %v659 = vmax.f32 %v613, 0.0
    %v660 = vmax.f32 %v617, 0.0
    %v661 = vmax.f32 %v623, 0.0
    %v662 = vmax.f32 %v627, 0.0
    %v663 = vmax.f32 %v633, 0.0
    %v664 = vmax.f32 %v637, 0.0
    %v665 = vmax.f32 %v643, 0.0
    %v666 = vmax.f32 %v647, 0.0
    %v667 = vld [vmem:[%s7] sm:$0x1]
    %669 = vset.pattern.permute.xlu0 25
    %670 = vperm.xlu0 %669, %v45
    %v671 = vpop.permute.xlu0 %670
    %674 = vset.pattern.permute.xlu0 25
    %675 = vperm.xlu0 %674, %v46
    %v676 = vpop.permute.xlu0 %675
    %679 = vset.pattern.permute.xlu0 25
    %680 = vperm.xlu0 %679, %v47
    %v681 = vpop.permute.xlu0 %680
    %684 = vset.pattern.permute.xlu0 25
    %685 = vperm.xlu0 %684, %v48
    %v686 = vpop.permute.xlu0 %685
    %689 = vset.pattern.permute.xlu0 25
    %690 = vperm.xlu0 %689, %v49
    %v691 = vpop.permute.xlu0 %690
    %694 = vset.pattern.permute.xlu0 25
    %695 = vperm.xlu0 %694, %v50
    %v696 = vpop.permute.xlu0 %695
    %699 = vset.pattern.permute.xlu0 25
    %700 = vperm.xlu0 %699, %v51
    %v701 = vpop.permute.xlu0 %700
    %704 = vset.pattern.permute.xlu0 25
    %705 = vperm.xlu0 %704, %v52
    %v706 = vpop.permute.xlu0 %705
    %709 = vset.pattern.permute.xlu0 25
    %710 = vperm.xlu0 %709, %v53
    %v711 = vpop.permute.xlu0 %710
    %714 = vset.pattern.permute.xlu0 25
    %715 = vperm.xlu0 %714, %v54
    %v716 = vpop.permute.xlu0 %715
    %719 = vset.pattern.permute.xlu0 25
    %720 = vperm.xlu0 %719, %v55
    %v721 = vpop.permute.xlu0 %720
    %724 = vset.pattern.permute.xlu0 25
    %725 = vperm.xlu0 %724, %v56
    %v726 = vpop.permute.xlu0 %725
    %729 = vset.pattern.permute.xlu0 25
    %730 = vperm.xlu0 %729, %v57
    %v731 = vpop.permute.xlu0 %730
    %734 = vset.pattern.permute.xlu0 25
    %735 = vperm.xlu0 %734, %v58
    %v736 = vpop.permute.xlu0 %735
    %739 = vset.pattern.permute.xlu0 25
    %740 = vperm.xlu0 %739, %v59
    %v741 = vpop.permute.xlu0 %740
    %744 = vset.pattern.permute.xlu0 25
    %745 = vperm.xlu0 %744, %v60
    %v746 = vpop.permute.xlu0 %745
    %v749 = vlaneseq
    %v750 = vshrl.u32 %v749, 7
    %v751 = vsub.s32 0, %v750
    %v752 = vrot.slane %v667, %v751
    %v754 = vmul.f32 %v671, %v752
    %v755 = vmul.f32 %v676, %v752
    %v756 = vmul.f32 %v681, %v752
    %v757 = vmul.f32 %v686, %v752
    %v758 = vmul.f32 %v691, %v752
    %v759 = vmul.f32 %v696, %v752
    %v760 = vmul.f32 %v701, %v752
    %v761 = vmul.f32 %v706, %v752
    %v762 = vmul.f32 %v711, %v752
    %v763 = vmul.f32 %v716, %v752
    %v764 = vmul.f32 %v721, %v752
    %v765 = vmul.f32 %v726, %v752
    %v766 = vmul.f32 %v731, %v752
    %v767 = vmul.f32 %v736, %v752
    %v768 = vmul.f32 %v741, %v752
    %v769 = vmul.f32 %v746, %v752
    %v770 = vadd.f32 %v575, %v754
    %v771 = vadd.f32 %v579, %v755
    %v772 = vadd.f32 %v585, %v756
    %v773 = vadd.f32 %v589, %v757
    %v774 = vadd.f32 %v595, %v758
    %v775 = vadd.f32 %v599, %v759
    %v776 = vadd.f32 %v605, %v760
    %v777 = vadd.f32 %v609, %v761
    %v778 = vadd.f32 %v615, %v762
    %v779 = vadd.f32 %v619, %v763
    %v780 = vadd.f32 %v625, %v764
    %v781 = vadd.f32 %v629, %v765
    %v782 = vadd.f32 %v635, %v766
    %v783 = vadd.f32 %v639, %v767
    %v784 = vadd.f32 %v645, %v768
    %v785 = vadd.f32 %v649, %v769
    %v786 = vmax.f32 %v770, 0.0
    %v787 = vmax.f32 %v771, 0.0
    %v788 = vmax.f32 %v772, 0.0
    %v789 = vmax.f32 %v773, 0.0
    %v790 = vmax.f32 %v774, 0.0
    %v791 = vmax.f32 %v775, 0.0
    %v792 = vmax.f32 %v776, 0.0
    %v793 = vmax.f32 %v777, 0.0
    %v794 = vmax.f32 %v778, 0.0
    %v795 = vmax.f32 %v779, 0.0
    %v796 = vmax.f32 %v780, 0.0
    %v797 = vmax.f32 %v781, 0.0
    %v798 = vmax.f32 %v782, 0.0
    %v799 = vmax.f32 %v783, 0.0
    %v800 = vmax.f32 %v784, 0.0
    %v801 = vmax.f32 %v785, 0.0
    %s802 = scalar_lea.vmem [#allocation2], 64
    %v803 = vld [vmem:[%s802] sm:$0xf]
    %v804 = vld [vmem:[%s802 + $0x4] sm:$0xf]
    %v805 = vld [vmem:[%s802 + $0x8] sm:$0xf]
    %v806 = vld [vmem:[%s802 + $0xc] sm:$0xf]
    %v807 = vld [vmem:[%s802 + $0x10] sm:$0xf]
    %v808 = vld [vmem:[%s802 + $0x14] sm:$0xf]
    %v809 = vld [vmem:[%s802 + $0x18] sm:$0xf]
    %v810 = vld [vmem:[%s802 + $0x1c] sm:$0xf]
    %v811 = vld [vmem:[%s802 + $0x20] sm:$0xf]
    %v812 = vld [vmem:[%s802 + $0x24] sm:$0xf]
    %v813 = vld [vmem:[%s802 + $0x28] sm:$0xf]
    %v814 = vld [vmem:[%s802 + $0x2c] sm:$0xf]
    %v815 = vld [vmem:[%s802 + $0x30] sm:$0xf]
    %v816 = vld [vmem:[%s802 + $0x34] sm:$0xf]
    %v817 = vld [vmem:[%s802 + $0x38] sm:$0xf]
    %v818 = vld [vmem:[%s802 + $0x3c] sm:$0xf]
    %s819 = scalar_lea.vmem %s4, 1
    %v820 = vld [vmem:[%s819] sm:$0x1]
    %v821 = vpack.c.bf16 %v787, %v786
    %v822 = vpack.c.bf16 %v789, %v788
    %v823 = vpack.c.bf16 %v791, %v790
    %v824 = vpack.c.bf16 %v793, %v792
    %v825 = vpack.c.bf16 %v795, %v794
    %v826 = vpack.c.bf16 %v797, %v796
    %v827 = vpack.c.bf16 %v799, %v798
    %v828 = vpack.c.bf16 %v801, %v800
    %v830 = vlaneseq
    %v831 = vshrl.u32 %v830, 7
    %v832 = vsub.s32 0, %v831
    %v833 = vrot.slane %v820, %v832
    %v851 = vunpack.c.l.b16 %v803
    %v852 = vunpack.c.l.b16 %v804
    %v853 = vunpack.c.l.b16 %v805
    %v854 = vunpack.c.l.b16 %v806
    %v855 = vunpack.c.l.b16 %v807
    %v856 = vunpack.c.l.b16 %v808
    %v857 = vunpack.c.l.b16 %v809
    %v858 = vunpack.c.l.b16 %v810
    %v859 = vunpack.c.l.b16 %v811
    %v860 = vunpack.c.l.b16 %v812
    %v861 = vunpack.c.l.b16 %v813
    %v862 = vunpack.c.l.b16 %v814
    %v863 = vunpack.c.l.b16 %v815
    %v864 = vunpack.c.l.b16 %v816
    %v865 = vunpack.c.l.b16 %v817
    %v866 = vunpack.c.l.b16 %v818
    %v867 = vpack.c.b16 %v852, %v851
    %v868 = vpack.c.b16 %v854, %v853
    %v869 = vpack.c.b16 %v856, %v855
    %v870 = vpack.c.b16 %v858, %v857
    %v871 = vpack.c.b16 %v860, %v859
    %v872 = vpack.c.b16 %v862, %v861
    %v873 = vpack.c.b16 %v864, %v863
    %v874 = vpack.c.b16 %v866, %v865
    %883 = vmatprep.subr.bf16.mxu0 0
    %884 = vmatpush1.bf16.msra.mxu0 %v867
    %885 = vmatprep.subr.bf16.mxu0 0
    %886 = vmatpush1.bf16.msra.mxu0 %v868
    %887 = vmatprep.subr.bf16.mxu0 0
    %888 = vmatpush1.bf16.msra.mxu0 %v869
    %889 = vmatprep.subr.bf16.mxu0 0
    %890 = vmatpush1.bf16.msra.mxu0 %v870
    %891 = vmatprep.subr.bf16.mxu0 0
    %892 = vmatpush1.bf16.msra.mxu0 %v871
    %893 = vmatprep.subr.bf16.mxu0 0
    %894 = vmatpush1.bf16.msra.mxu0 %v872
    %895 = vmatprep.subr.bf16.mxu0 0
    %896 = vmatpush1.bf16.msra.mxu0 %v873
    %897 = vmatprep.subr.bf16.mxu0 0
    %898 = vmatpush1.bf16.msra.mxu0 %v874
    %899 = vmatprep.subr.bf16.mxu0 0
    %900 = vmatpush1.bf16.msra.mxu0 0
    %901 = vmatprep.subr.bf16.mxu0 0
    %902 = vmatpush1.bf16.msra.mxu0 0
    %903 = vmatprep.subr.bf16.mxu0 0
    %904 = vmatpush1.bf16.msra.mxu0 0
    %905 = vmatprep.subr.bf16.mxu0 0
    %906 = vmatpush1.bf16.msra.mxu0 0
    %907 = vmatprep.subr.bf16.mxu0 0
    %908 = vmatpush1.bf16.msra.mxu0 0
    %909 = vmatprep.subr.bf16.mxu0 0
    %910 = vmatpush1.bf16.msra.mxu0 0
    %911 = vmatprep.subr.bf16.mxu0 0
    %912 = vmatpush1.bf16.msra.mxu0 0
    %913 = vmatprep.subr.bf16.mxu0 0
    %914 = vmatpush1.bf16.msra.mxu0 0
    %915 = vmatprep.mubr.bf16.mxu0 0
    %916 = vmatmul.mubr.bf16.gmra.mrb[0].mxu0 %v821
    %v917 = vpop.f32.mrb[0].mxu0
    %v918 = vadd.f32 %v833, %v917
    %v919 = vpop.f32.mrb[0].mxu0
    %v920 = vpop.f32.mrb[0].mxu0
    %v921 = vadd.f32 %v833, %v920
    %v922 = vpop.f32.mrb[0].mxu0
    %923 = vmatprep.mubr.bf16.mxu0 0
    %924 = vmatmul.mubr.bf16.gmra.mrb[0].mxu0 %v822
    %v925 = vpop.f32.mrb[0].mxu0
    %v926 = vadd.f32 %v833, %v925
    %v927 = vpop.f32.mrb[0].mxu0
    %v928 = vpop.f32.mrb[0].mxu0
    %v929 = vadd.f32 %v833, %v928
    %v930 = vpop.f32.mrb[0].mxu0
    %931 = vmatprep.mubr.bf16.mxu0 0
    %932 = vmatmul.mubr.bf16.gmra.mrb[0].mxu0 %v823
    %v933 = vpop.f32.mrb[0].mxu0
    %v934 = vadd.f32 %v833, %v933
    %v935 = vpop.f32.mrb[0].mxu0
    %v936 = vpop.f32.mrb[0].mxu0
    %v937 = vadd.f32 %v833, %v936
    %v938 = vpop.f32.mrb[0].mxu0
    %939 = vmatprep.mubr.bf16.mxu0 0
    %940 = vmatmul.mubr.bf16.gmra.mrb[0].mxu0 %v824
    %v941 = vpop.f32.mrb[0].mxu0
    %v942 = vadd.f32 %v833, %v941
    %v943 = vpop.f32.mrb[0].mxu0
    %v944 = vpop.f32.mrb[0].mxu0
    %v945 = vadd.f32 %v833, %v944
    %v946 = vpop.f32.mrb[0].mxu0
    %947 = vmatprep.mubr.bf16.mxu0 0
    %948 = vmatmul.mubr.bf16.gmra.mrb[0].mxu0 %v825
    %v949 = vpop.f32.mrb[0].mxu0
    %v950 = vadd.f32 %v833, %v949
    %v951 = vpop.f32.mrb[0].mxu0
    %v952 = vpop.f32.mrb[0].mxu0
    %v953 = vadd.f32 %v833, %v952
    %v954 = vpop.f32.mrb[0].mxu0
    %955 = vmatprep.mubr.bf16.mxu0 0
    %956 = vmatmul.mubr.bf16.gmra.mrb[0].mxu0 %v826
    %v957 = vpop.f32.mrb[0].mxu0
    %v958 = vadd.f32 %v833, %v957
    %v959 = vpop.f32.mrb[0].mxu0
    %v960 = vpop.f32.mrb[0].mxu0
    %v961 = vadd.f32 %v833, %v960
    %v962 = vpop.f32.mrb[0].mxu0
    %963 = vmatprep.mubr.bf16.mxu0 0
    %964 = vmatmul.mubr.bf16.gmra.mrb[0].mxu0 %v827
    %v965 = vpop.f32.mrb[0].mxu0
    %v966 = vadd.f32 %v833, %v965
    %v967 = vpop.f32.mrb[0].mxu0
    %v968 = vpop.f32.mrb[0].mxu0
    %v969 = vadd.f32 %v833, %v968
    %v970 = vpop.f32.mrb[0].mxu0
    %971 = vmatprep.mubr.bf16.mxu0 0
    %972 = vmatmul.mubr.bf16.gmra.mrb[0].mxu0 %v828
    %v973 = vpop.f32.mrb[0].mxu0
    %v974 = vadd.f32 %v833, %v973
    %v975 = vpop.f32.mrb[0].mxu0
    %v976 = vpop.f32.mrb[0].mxu0
    %v977 = vadd.f32 %v833, %v976
    %v978 = vpop.f32.mrb[0].mxu0
    %979 = vdwg.mxu0
    %v980 = vmax.f32 %v918, 0.0
    %v981 = vmax.f32 %v921, 0.0
    %v982 = vmax.f32 %v926, 0.0
    %v983 = vmax.f32 %v929, 0.0
    %v984 = vmax.f32 %v934, 0.0
    %v985 = vmax.f32 %v937, 0.0
    %v986 = vmax.f32 %v942, 0.0
    %v987 = vmax.f32 %v945, 0.0
    %v988 = vmax.f32 %v950, 0.0
    %v989 = vmax.f32 %v953, 0.0
    %v990 = vmax.f32 %v958, 0.0
    %v991 = vmax.f32 %v961, 0.0
    %v992 = vmax.f32 %v966, 0.0
    %v993 = vmax.f32 %v969, 0.0
    %v994 = vmax.f32 %v974, 0.0
    %v995 = vmax.f32 %v977, 0.0
    %s996 = scalar_lea.vmem [#allocation2], 128
    %v997 = vld [vmem:[%s996] sm:$0xf]
    %v998 = vld [vmem:[%s996 + $0x4] sm:$0xf]
    %v999 = vld [vmem:[%s996 + $0x8] sm:$0xf]
    %v1000 = vld [vmem:[%s996 + $0xc] sm:$0xf]
    %v1001 = vld [vmem:[%s996 + $0x10] sm:$0xf]
    %v1002 = vld [vmem:[%s996 + $0x14] sm:$0xf]
    %v1003 = vld [vmem:[%s996 + $0x18] sm:$0xf]
    %v1004 = vld [vmem:[%s996 + $0x1c] sm:$0xf]
    %v1005 = vld [vmem:[%s996 + $0x20] sm:$0xf]
    %v1006 = vld [vmem:[%s996 + $0x24] sm:$0xf]
    %v1007 = vld [vmem:[%s996 + $0x28] sm:$0xf]
    %v1008 = vld [vmem:[%s996 + $0x2c] sm:$0xf]
    %v1009 = vld [vmem:[%s996 + $0x30] sm:$0xf]
    %v1010 = vld [vmem:[%s996 + $0x34] sm:$0xf]
    %v1011 = vld [vmem:[%s996 + $0x38] sm:$0xf]
    %v1012 = vld [vmem:[%s996 + $0x3c] sm:$0xf]
    %s1013 = scalar_lea.vmem %s4, 2
    %v1014 = vld [vmem:[%s1013] sm:$0x1]
    %v1015 = vpack.c.bf16 %v981, %v980
    %v1016 = vpack.c.bf16 %v983, %v982
    %v1017 = vpack.c.bf16 %v985, %v984
    %v1018 = vpack.c.bf16 %v987, %v986
    %v1019 = vpack.c.bf16 %v989, %v988
    %v1020 = vpack.c.bf16 %v991, %v990
    %v1021 = vpack.c.bf16 %v993, %v992
    %v1022 = vpack.c.bf16 %v995, %v994
    %v1024 = vlaneseq
    %v1025 = vshrl.u32 %v1024, 7
    %v1026 = vsub.s32 0, %v1025
    %v1027 = vrot.slane %v1014, %v1026
    %v1045 = vunpack.c.l.b16 %v997
    %v1046 = vunpack.c.l.b16 %v998
    %v1047 = vunpack.c.l.b16 %v999
    %v1048 = vunpack.c.l.b16 %v1000
    %v1049 = vunpack.c.l.b16 %v1001
    %v1050 = vunpack.c.l.b16 %v1002
    %v1051 = vunpack.c.l.b16 %v1003
    %v1052 = vunpack.c.l.b16 %v1004
    %v1053 = vunpack.c.l.b16 %v1005
    %v1054 = vunpack.c.l.b16 %v1006
    %v1055 = vunpack.c.l.b16 %v1007
    %v1056 = vunpack.c.l.b16 %v1008
    %v1057 = vunpack.c.l.b16 %v1009
    %v1058 = vunpack.c.l.b16 %v1010
    %v1059 = vunpack.c.l.b16 %v1011
    %v1060 = vunpack.c.l.b16 %v1012
    %v1061 = vpack.c.b16 %v1046, %v1045
    %v1062 = vpack.c.b16 %v1048, %v1047
    %v1063 = vpack.c.b16 %v1050, %v1049
    %v1064 = vpack.c.b16 %v1052, %v1051
    %v1065 = vpack.c.b16 %v1054, %v1053
    %v1066 = vpack.c.b16 %v1056, %v1055
    %v1067 = vpack.c.b16 %v1058, %v1057
    %v1068 = vpack.c.b16 %v1060, %v1059
    %1077 = vmatprep.subr.bf16.mxu0 0
    %1078 = vmatpush1.bf16.msra.mxu0 %v1061
    %1079 = vmatprep.subr.bf16.mxu0 0
    %1080 = vmatpush1.bf16.msra.mxu0 %v1062
    %1081 = vmatprep.subr.bf16.mxu0 0
    %1082 = vmatpush1.bf16.msra.mxu0 %v1063
    %1083 = vmatprep.subr.bf16.mxu0 0
    %1084 = vmatpush1.bf16.msra.mxu0 %v1064
    %1085 = vmatprep.subr.bf16.mxu0 0
    %1086 = vmatpush1.bf16.msra.mxu0 %v1065
    %1087 = vmatprep.subr.bf16.mxu0 0
    %1088 = vmatpush1.bf16.msra.mxu0 %v1066
    %1089 = vmatprep.subr.bf16.mxu0 0
    %1090 = vmatpush1.bf16.msra.mxu0 %v1067
    %1091 = vmatprep.subr.bf16.mxu0 0
    %1092 = vmatpush1.bf16.msra.mxu0 %v1068
    %1093 = vmatprep.subr.bf16.mxu0 0
    %1094 = vmatpush1.bf16.msra.mxu0 0
    %1095 = vmatprep.subr.bf16.mxu0 0
    %1096 = vmatpush1.bf16.msra.mxu0 0
    %1097 = vmatprep.subr.bf16.mxu0 0
    %1098 = vmatpush1.bf16.msra.mxu0 0
    %1099 = vmatprep.subr.bf16.mxu0 0
    %1100 = vmatpush1.bf16.msra.mxu0 0
    %1101 = vmatprep.subr.bf16.mxu0 0
    %1102 = vmatpush1.bf16.msra.mxu0 0
    %1103 = vmatprep.subr.bf16.mxu0 0
    %1104 = vmatpush1.bf16.msra.mxu0 0
    %1105 = vmatprep.subr.bf16.mxu0 0
    %1106 = vmatpush1.bf16.msra.mxu0 0
    %1107 = vmatprep.subr.bf16.mxu0 0
    %1108 = vmatpush1.bf16.msra.mxu0 0
    %1109 = vmatprep.mubr.bf16.mxu0 0
    %1110 = vmatmul.mubr.bf16.gmra.mrb[0].mxu0 %v1015
    %v1111 = vpop.f32.mrb[0].mxu0
    %v1112 = vadd.f32 %v1027, %v1111
    %v1113 = vpop.f32.mrb[0].mxu0
    %v1114 = vpop.f32.mrb[0].mxu0
    %v1115 = vadd.f32 %v1027, %v1114
    %v1116 = vpop.f32.mrb[0].mxu0
    %1117 = vmatprep.mubr.bf16.mxu0 0
    %1118 = vmatmul.mubr.bf16.gmra.mrb[0].mxu0 %v1016
    %v1119 = vpop.f32.mrb[0].mxu0
    %v1120 = vadd.f32 %v1027, %v1119
    %v1121 = vpop.f32.mrb[0].mxu0
    %v1122 = vpop.f32.mrb[0].mxu0
    %v1123 = vadd.f32 %v1027, %v1122
    %v1124 = vpop.f32.mrb[0].mxu0
    %1125 = vmatprep.mubr.bf16.mxu0 0
    %1126 = vmatmul.mubr.bf16.gmra.mrb[0].mxu0 %v1017
    %v1127 = vpop.f32.mrb[0].mxu0
    %v1128 = vadd.f32 %v1027, %v1127
    %v1129 = vpop.f32.mrb[0].mxu0
    %v1130 = vpop.f32.mrb[0].mxu0
    %v1131 = vadd.f32 %v1027, %v1130
    %v1132 = vpop.f32.mrb[0].mxu0
    %1133 = vmatprep.mubr.bf16.mxu0 0
    %1134 = vmatmul.mubr.bf16.gmra.mrb[0].mxu0 %v1018
    %v1135 = vpop.f32.mrb[0].mxu0
    %v1136 = vadd.f32 %v1027, %v1135
    %v1137 = vpop.f32.mrb[0].mxu0
    %v1138 = vpop.f32.mrb[0].mxu0
    %v1139 = vadd.f32 %v1027, %v1138
    %v1140 = vpop.f32.mrb[0].mxu0
    %1141 = vmatprep.mubr.bf16.mxu0 0
    %1142 = vmatmul.mubr.bf16.gmra.mrb[0].mxu0 %v1019
    %v1143 = vpop.f32.mrb[0].mxu0
    %v1144 = vadd.f32 %v1027, %v1143
    %v1145 = vpop.f32.mrb[0].mxu0
    %v1146 = vpop.f32.mrb[0].mxu0
    %v1147 = vadd.f32 %v1027, %v1146
    %v1148 = vpop.f32.mrb[0].mxu0
    %1149 = vmatprep.mubr.bf16.mxu0 0
    %1150 = vmatmul.mubr.bf16.gmra.mrb[0].mxu0 %v1020
    %v1151 = vpop.f32.mrb[0].mxu0
    %v1152 = vadd.f32 %v1027, %v1151
    %v1153 = vpop.f32.mrb[0].mxu0
    %v1154 = vpop.f32.mrb[0].mxu0
    %v1155 = vadd.f32 %v1027, %v1154
    %v1156 = vpop.f32.mrb[0].mxu0
    %1157 = vmatprep.mubr.bf16.mxu0 0
    %1158 = vmatmul.mubr.bf16.gmra.mrb[0].mxu0 %v1021
    %v1159 = vpop.f32.mrb[0].mxu0
    %v1160 = vadd.f32 %v1027, %v1159
    %v1161 = vpop.f32.mrb[0].mxu0
    %v1162 = vpop.f32.mrb[0].mxu0
    %v1163 = vadd.f32 %v1027, %v1162
    %v1164 = vpop.f32.mrb[0].mxu0
    %1165 = vmatprep.mubr.bf16.mxu0 0
    %1166 = vmatmul.mubr.bf16.gmra.mrb[0].mxu0 %v1022
    %v1167 = vpop.f32.mrb[0].mxu0
    %v1168 = vadd.f32 %v1027, %v1167
    %v1169 = vpop.f32.mrb[0].mxu0
    %v1170 = vpop.f32.mrb[0].mxu0
    %v1171 = vadd.f32 %v1027, %v1170
    %v1172 = vpop.f32.mrb[0].mxu0
    %1173 = vdwg.mxu0
    %v1174 = vmax.f32 %v1112, 0.0
    %v1175 = vmax.f32 %v1115, 0.0
    %v1176 = vmax.f32 %v1120, 0.0
    %v1177 = vmax.f32 %v1123, 0.0
    %v1178 = vmax.f32 %v1128, 0.0
    %v1179 = vmax.f32 %v1131, 0.0
    %v1180 = vmax.f32 %v1136, 0.0
    %v1181 = vmax.f32 %v1139, 0.0
    %v1182 = vmax.f32 %v1144, 0.0
    %v1183 = vmax.f32 %v1147, 0.0
    %v1184 = vmax.f32 %v1152, 0.0
    %v1185 = vmax.f32 %v1155, 0.0
    %v1186 = vmax.f32 %v1160, 0.0
    %v1187 = vmax.f32 %v1163, 0.0
    %v1188 = vmax.f32 %v1168, 0.0
    %v1189 = vmax.f32 %v1171, 0.0
    %s1190 = scalar_lea.vmem [#allocation2], 192
    %v1191 = vld [vmem:[%s1190] sm:$0xf]
    %v1192 = vld [vmem:[%s1190 + $0x4] sm:$0xf]
    %v1193 = vld [vmem:[%s1190 + $0x8] sm:$0xf]
    %v1194 = vld [vmem:[%s1190 + $0xc] sm:$0xf]
    %v1195 = vld [vmem:[%s1190 + $0x10] sm:$0xf]
    %v1196 = vld [vmem:[%s1190 + $0x14] sm:$0xf]
    %v1197 = vld [vmem:[%s1190 + $0x18] sm:$0xf]
    %v1198 = vld [vmem:[%s1190 + $0x1c] sm:$0xf]
    %v1199 = vld [vmem:[%s1190 + $0x20] sm:$0xf]
    %v1200 = vld [vmem:[%s1190 + $0x24] sm:$0xf]
    %v1201 = vld [vmem:[%s1190 + $0x28] sm:$0xf]
    %v1202 = vld [vmem:[%s1190 + $0x2c] sm:$0xf]
    %v1203 = vld [vmem:[%s1190 + $0x30] sm:$0xf]
    %v1204 = vld [vmem:[%s1190 + $0x34] sm:$0xf]
    %v1205 = vld [vmem:[%s1190 + $0x38] sm:$0xf]
    %v1206 = vld [vmem:[%s1190 + $0x3c] sm:$0xf]
    %s1207 = scalar_lea.vmem %s4, 3
    %v1208 = vld [vmem:[%s1207] sm:$0x1]
    %v1209 = vpack.c.bf16 %v1175, %v1174
    %v1210 = vpack.c.bf16 %v1177, %v1176
    %v1211 = vpack.c.bf16 %v1179, %v1178
    %v1212 = vpack.c.bf16 %v1181, %v1180
    %v1213 = vpack.c.bf16 %v1183, %v1182
    %v1214 = vpack.c.bf16 %v1185, %v1184
    %v1215 = vpack.c.bf16 %v1187, %v1186
    %v1216 = vpack.c.bf16 %v1189, %v1188
    %v1218 = vlaneseq
    %v1219 = vshrl.u32 %v1218, 7
    %v1220 = vsub.s32 0, %v1219
    %v1221 = vrot.slane %v1208, %v1220
    %v1239 = vunpack.c.l.b16 %v1191
    %v1240 = vunpack.c.l.b16 %v1192
    %v1241 = vunpack.c.l.b16 %v1193
    %v1242 = vunpack.c.l.b16 %v1194
    %v1243 = vunpack.c.l.b16 %v1195
    %v1244 = vunpack.c.l.b16 %v1196
    %v1245 = vunpack.c.l.b16 %v1197
    %v1246 = vunpack.c.l.b16 %v1198
    %v1247 = vunpack.c.l.b16 %v1199
    %v1248 = vunpack.c.l.b16 %v1200
    %v1249 = vunpack.c.l.b16 %v1201
    %v1250 = vunpack.c.l.b16 %v1202
    %v1251 = vunpack.c.l.b16 %v1203
    %v1252 = vunpack.c.l.b16 %v1204
    %v1253 = vunpack.c.l.b16 %v1205
    %v1254 = vunpack.c.l.b16 %v1206
    %v1255 = vpack.c.b16 %v1240, %v1239
    %v1256 = vpack.c.b16 %v1242, %v1241
    %v1257 = vpack.c.b16 %v1244, %v1243
    %v1258 = vpack.c.b16 %v1246, %v1245
    %v1259 = vpack.c.b16 %v1248, %v1247
    %v1260 = vpack.c.b16 %v1250, %v1249
    %v1261 = vpack.c.b16 %v1252, %v1251
    %v1262 = vpack.c.b16 %v1254, %v1253
    %1271 = vmatprep.subr.bf16.mxu0 0
    %1272 = vmatpush1.bf16.msra.mxu0 %v1255
    %1273 = vmatprep.subr.bf16.mxu0 0
    %1274 = vmatpush1.bf16.msra.mxu0 %v1256
    %1275 = vmatprep.subr.bf16.mxu0 0
    %1276 = vmatpush1.bf16.msra.mxu0 %v1257
    %1277 = vmatprep.subr.bf16.mxu0 0
    %1278 = vmatpush1.bf16.msra.mxu0 %v1258
    %1279 = vmatprep.subr.bf16.mxu0 0
    %1280 = vmatpush1.bf16.msra.mxu0 %v1259
    %1281 = vmatprep.subr.bf16.mxu0 0
    %1282 = vmatpush1.bf16.msra.mxu0 %v1260
    %1283 = vmatprep.subr.bf16.mxu0 0
    %1284 = vmatpush1.bf16.msra.mxu0 %v1261
    %1285 = vmatprep.subr.bf16.mxu0 0
    %1286 = vmatpush1.bf16.msra.mxu0 %v1262
    %1287 = vmatprep.subr.bf16.mxu0 0
    %1288 = vmatpush1.bf16.msra.mxu0 0
    %1289 = vmatprep.subr.bf16.mxu0 0
    %1290 = vmatpush1.bf16.msra.mxu0 0
    %1291 = vmatprep.subr.bf16.mxu0 0
    %1292 = vmatpush1.bf16.msra.mxu0 0
    %1293 = vmatprep.subr.bf16.mxu0 0
    %1294 = vmatpush1.bf16.msra.mxu0 0
    %1295 = vmatprep.subr.bf16.mxu0 0
    %1296 = vmatpush1.bf16.msra.mxu0 0
    %1297 = vmatprep.subr.bf16.mxu0 0
    %1298 = vmatpush1.bf16.msra.mxu0 0
    %1299 = vmatprep.subr.bf16.mxu0 0
    %1300 = vmatpush1.bf16.msra.mxu0 0
    %1301 = vmatprep.subr.bf16.mxu0 0
    %1302 = vmatpush1.bf16.msra.mxu0 0
    %1303 = vmatprep.mubr.bf16.mxu0 0
    %1304 = vmatmul.mubr.bf16.gmra.mrb[0].mxu0 %v1209
    %v1305 = vpop.f32.mrb[0].mxu0
    %v1306 = vadd.f32 %v1221, %v1305
    %v1307 = vpop.f32.mrb[0].mxu0
    %v1308 = vpop.f32.mrb[0].mxu0
    %v1309 = vadd.f32 %v1221, %v1308
    %v1310 = vpop.f32.mrb[0].mxu0
    %1311 = vmatprep.mubr.bf16.mxu0 0
    %1312 = vmatmul.mubr.bf16.gmra.mrb[0].mxu0 %v1210
    %v1313 = vpop.f32.mrb[0].mxu0
    %v1314 = vadd.f32 %v1221, %v1313
    %v1315 = vpop.f32.mrb[0].mxu0
    %v1316 = vpop.f32.mrb[0].mxu0
    %v1317 = vadd.f32 %v1221, %v1316
    %v1318 = vpop.f32.mrb[0].mxu0
    %1319 = vmatprep.mubr.bf16.mxu0 0
    %1320 = vmatmul.mubr.bf16.gmra.mrb[0].mxu0 %v1211
    %v1321 = vpop.f32.mrb[0].mxu0
    %v1322 = vadd.f32 %v1221, %v1321
    %v1323 = vpop.f32.mrb[0].mxu0
    %v1324 = vpop.f32.mrb[0].mxu0
    %v1325 = vadd.f32 %v1221, %v1324
    %v1326 = vpop.f32.mrb[0].mxu0
    %1327 = vmatprep.mubr.bf16.mxu0 0
    %1328 = vmatmul.mubr.bf16.gmra.mrb[0].mxu0 %v1212
    %v1329 = vpop.f32.mrb[0].mxu0
    %v1330 = vadd.f32 %v1221, %v1329
    %v1331 = vpop.f32.mrb[0].mxu0
    %v1332 = vpop.f32.mrb[0].mxu0
    %v1333 = vadd.f32 %v1221, %v1332
    %v1334 = vpop.f32.mrb[0].mxu0
    %1335 = vmatprep.mubr.bf16.mxu0 0
    %1336 = vmatmul.mubr.bf16.gmra.mrb[0].mxu0 %v1213
    %v1337 = vpop.f32.mrb[0].mxu0
    %v1338 = vadd.f32 %v1221, %v1337
    %v1339 = vpop.f32.mrb[0].mxu0
    %v1340 = vpop.f32.mrb[0].mxu0
    %v1341 = vadd.f32 %v1221, %v1340
    %v1342 = vpop.f32.mrb[0].mxu0
    %1343 = vmatprep.mubr.bf16.mxu0 0
    %1344 = vmatmul.mubr.bf16.gmra.mrb[0].mxu0 %v1214
    %v1345 = vpop.f32.mrb[0].mxu0
    %v1346 = vadd.f32 %v1221, %v1345
    %v1347 = vpop.f32.mrb[0].mxu0
    %v1348 = vpop.f32.mrb[0].mxu0
    %v1349 = vadd.f32 %v1221, %v1348
    %v1350 = vpop.f32.mrb[0].mxu0
    %1351 = vmatprep.mubr.bf16.mxu0 0
    %1352 = vmatmul.mubr.bf16.gmra.mrb[0].mxu0 %v1215
    %v1353 = vpop.f32.mrb[0].mxu0
    %v1354 = vadd.f32 %v1221, %v1353
    %v1355 = vpop.f32.mrb[0].mxu0
    %v1356 = vpop.f32.mrb[0].mxu0
    %v1357 = vadd.f32 %v1221, %v1356
    %v1358 = vpop.f32.mrb[0].mxu0
    %1359 = vmatprep.mubr.bf16.mxu0 0
    %1360 = vmatmul.mubr.bf16.gmra.mrb[0].mxu0 %v1216
    %v1361 = vpop.f32.mrb[0].mxu0
    %v1362 = vadd.f32 %v1221, %v1361
    %v1363 = vpop.f32.mrb[0].mxu0
    %v1364 = vpop.f32.mrb[0].mxu0
    %v1365 = vadd.f32 %v1221, %v1364
    %v1366 = vpop.f32.mrb[0].mxu0
    %1367 = vdwg.mxu0
    %v1368 = vadd.f32 %v651, %v1306
    %v1369 = vadd.f32 %v652, %v1309
    %v1370 = vadd.f32 %v653, %v1314
    %v1371 = vadd.f32 %v654, %v1317
    %v1372 = vadd.f32 %v655, %v1322
    %v1373 = vadd.f32 %v656, %v1325
    %v1374 = vadd.f32 %v657, %v1330
    %v1375 = vadd.f32 %v658, %v1333
    %v1376 = vadd.f32 %v659, %v1338
    %v1377 = vadd.f32 %v660, %v1341
    %v1378 = vadd.f32 %v661, %v1346
    %v1379 = vadd.f32 %v662, %v1349
    %v1380 = vadd.f32 %v663, %v1354
    %v1381 = vadd.f32 %v664, %v1357
    %v1382 = vadd.f32 %v665, %v1362
    %v1383 = vadd.f32 %v666, %v1365
    %1384 = vst [vmem:[#allocation5] sm:$0xff] %v1368
    %1385 = vst [vmem:[#allocation5 + $0x8] sm:$0xff] %v1369
    %1386 = vst [vmem:[#allocation5 + $0x10] sm:$0xff] %v1370
    %1387 = vst [vmem:[#allocation5 + $0x18] sm:$0xff] %v1371
    %1388 = vst [vmem:[#allocation5 + $0x20] sm:$0xff] %v1372
    %1389 = vst [vmem:[#allocation5 + $0x28] sm:$0xff] %v1373
    %1390 = vst [vmem:[#allocation5 + $0x30] sm:$0xff] %v1374
    %1391 = vst [vmem:[#allocation5 + $0x38] sm:$0xff] %v1375
    %1392 = vst [vmem:[#allocation5 + $0x40] sm:$0xff] %v1376
    %1393 = vst [vmem:[#allocation5 + $0x48] sm:$0xff] %v1377
    %1394 = vst [vmem:[#allocation5 + $0x50] sm:$0xff] %v1378
    %1395 = vst [vmem:[#allocation5 + $0x58] sm:$0xff] %v1379
    %1396 = vst [vmem:[#allocation5 + $0x60] sm:$0xff] %v1380
    %1397 = vst [vmem:[#allocation5 + $0x68] sm:$0xff] %v1381
    %1398 = vst [vmem:[#allocation5 + $0x70] sm:$0xff] %v1382
    %1399 = vst [vmem:[#allocation5 + $0x78] sm:$0xff] %v1383
    // Predicated region
    $region38: #{tpu_custom_call.1} parent=1 // pred_check
      _
    $region39: #{tpu_custom_call.1} parent=1 // pred_check_branch
      %1401 = sbr.rel (0) target = $region41
    $region40: #{tpu_custom_call.1} parent=1 // pred_region
      %s1403 = ssub.s32 2048, 2048
      %1404 = vsyncadd [#allocation4], %s1403
      %s1405 = sshll.u32 [#allocation5], 4
      %s1406 = int_to_ptr.vmem [resolvable:$true] %s1405
      %1411 = dma.vmem_to_hbm [thread:$0]  %s1406, 2048, %s8, [#allocation4], 128, 128, 8
    $region41: #{tpu_custom_call.1} parent=1 // pred_fallthru
      _
    // Predicated region
    $region42: #{tpu_custom_call.1} parent=1 // pred_check
      _
    $region43: #{tpu_custom_call.1} parent=1 // pred_check_branch
      %1413 = sbr.rel (0) target = $region45
    $region44: #{tpu_custom_call.1} parent=1 // pred_region
      %1414 = dma.done [#allocation4], 2048
    $region45: #{tpu_custom_call.1} parent=1 // pred_fallthru
      _
    %1415 = vsyncpa [#allocation3], 1
    %1416 = vsyncpa [#allocation4], 1

</llo_original>
